<compile_context>
chip_gen: v5e
topology: v5e:2x2
jax: 0.10.0
libtpu: 0.0.40
codegen_flags: <defaults>
</compile_context>

<pallas_src>
import math
import jax
import jax.numpy as jnp
from jax.experimental import pallas as pl
from jax.experimental.pallas import tpu as pltpu

D_MODEL = 32
NHEAD = 4
HEAD_DIM = D_MODEL // NHEAD
SEQ = 8
BATCH = 2
BL = BATCH * SEQ
FFN_HIDDEN = D_MODEL * 2          # FFN(d_model, d_model*2, d_model)
LN_EPS = 1e-5
LANE = 128                        # 128-lane alignment unit for packed param slabs


def encoder_layer_kernel(src_ref, pos_ref, wqkv_ref, wof1_ref, wfc2_ref, b_ref,
                         out_ref):
    D, L, B, H, HD = D_MODEL, SEQ, BATCH, NHEAD, HEAD_DIM

    src = src_ref[...].astype(jnp.float32)              # (B*L, D)
    qk = src + pos_ref[...].astype(jnp.float32)         # q = k = src + pos
    bias = b_ref[...]                                    # (8, 128): one bias per row

    # ---- fused Q|K|V projection (one MXU dispatch) --------------------------
    # LHS = [src+pos ; src] stacked along sublanes (8-aligned rows).
    # w_qkv is (D, 3*128): Wq*scale at lanes 0, Wk at 128, Wv at 256 (zero gaps).
    lhs = jnp.concatenate([qk, src], axis=0)             # (2*B*L, D)
    proj = jnp.dot(lhs, wqkv_ref[...], preferred_element_type=jnp.float32)

    q = proj[:BL, 0:D] + bias[0:1, :D]                   # scale pre-folded into Wq/bq
    k = proj[:BL, LANE:LANE + D] + bias[1:2, :D]
    v = proj[BL:, 2 * LANE:2 * LANE + D] + bias[2:3, :D]

    # ---- multi-head attention, batched over fused (batch*head) axis ---------
    def split_heads(x):                                   # (B*L, D) -> (B*H, L, hd)
        x = x.reshape(B, L, H, HD)
        x = jnp.transpose(x, (0, 2, 1, 3))                # (B, H, L, hd)
        return x.reshape(B * H, L, HD)

    qh, kh, vh = split_heads(q), split_heads(k), split_heads(v)
    s = jnp.einsum('nld,nmd->nlm', qh, kh,
                   preferred_element_type=jnp.float32)    # (B*H, L, L)
    m = jnp.max(s, axis=-1, keepdims=True)
    e = jnp.exp(s - m)
    p = e * pl.reciprocal(jnp.sum(e, axis=-1, keepdims=True), approx=True)
    o = jnp.einsum('nlm,nmd->nld', p, vh,
                   preferred_element_type=jnp.float32)    # (B*H, L, hd)

    attn = o.reshape(B, H, L, HD)
    attn = jnp.transpose(attn, (0, 2, 1, 3)).reshape(B * L, D)   # merge heads

    # ---- FFN with the attention out-projection folded into fc1 --------------
    # w_of1 = Wo^T @ W1^T padded to 128 lanes; padded lanes have zero weight and
    # zero bias -> stay exactly 0 through ReLU -> hit zero fc2 rows (exact).
    h1 = jnp.dot(attn, wof1_ref[...],
                 preferred_element_type=jnp.float32) + bias[3:4, :]   # (B*L, 128)
    h1 = jnp.maximum(h1, 0.0)
    src2 = jnp.dot(h1, wfc2_ref[...],
                   preferred_element_type=jnp.float32) + bias[4:5, :D]

    # ---- residual + LayerNorm (biased variance, eps=1e-5, like PyTorch) -----
    y = src2 + src
    mean = jnp.mean(y, axis=-1, keepdims=True)
    var = jnp.mean((y - mean) ** 2, axis=-1, keepdims=True)
    out = (y - mean) * jax.lax.rsqrt(var + LN_EPS)
    out = out * bias[5:6, :D] + bias[6:7, :D]             # gamma, beta

    out_ref[...] = out.astype(out_ref.dtype)              # direct (B*L, D) store


def transformer_encoder_layer(src_flat, pos_flat, w_qkv, w_of1, w_fc2, b_slab):
    """src_flat, pos_flat: (B*L, D). Packed params. Returns (B, L, D)."""
    out_flat = pl.pallas_call(
        encoder_layer_kernel,
        out_shape=jax.ShapeDtypeStruct((BL, D_MODEL), src_flat.dtype),
        grid=(1,),                                        # single step, no per-batch loop
        in_specs=[
            pl.BlockSpec((BL, D_MODEL), lambda i: (0, 0)),            # src
            pl.BlockSpec((BL, D_MODEL), lambda i: (0, 0)),            # pos
            pl.BlockSpec((D_MODEL, 3 * LANE), lambda i: (0, 0)),      # [Wq*s|Wk|Wv], 128-aligned
            pl.BlockSpec((D_MODEL, LANE), lambda i: (0, 0)),          # Wo^T @ W1^T (padded)
            pl.BlockSpec((LANE, D_MODEL), lambda i: (0, 0)),          # fc2^T (zero-padded rows)
            pl.BlockSpec((8, LANE), lambda i: (0, 0)),                # biases / LN params
        ],
        out_specs=pl.BlockSpec((BL, D_MODEL), lambda i: (0, 0)),
        compiler_params=pltpu.CompilerParams(dimension_semantics=("arbitrary",)),
    )(src_flat, pos_flat, w_qkv, w_of1, w_fc2, b_slab)
    return out_flat.reshape(BATCH, SEQ, D_MODEL)          # contiguous, free XLA reshape


def pack_params(in_proj_w, in_proj_b, out_proj_w, out_proj_b,
                fc1_w, fc1_b, fc2_w, fc2_b, ln_g, ln_b):
    """One-time host-side weight transform: scale folding, out_proj->fc1 fold,
    128-lane-aligned packing."""
    scale = 1.0 / math.sqrt(HEAD_DIM)
    wq, wk, wv = jnp.split(in_proj_w, 3, axis=0)
    bq, bk, bv = jnp.split(in_proj_b, 3)

    w_qkv = jnp.zeros((D_MODEL, 3 * LANE), jnp.float32)
    w_qkv = w_qkv.at[:, 0:D_MODEL].set(wq.T * scale)
    w_qkv = w_qkv.at[:, LANE:LANE + D_MODEL].set(wk.T)
    w_qkv = w_qkv.at[:, 2 * LANE:2 * LANE + D_MODEL].set(wv.T)

    # Fold attention out-projection into fc1 (no norm/activation in between).
    w_of1_core = out_proj_w.T @ fc1_w.T                    # (D, 2D)
    b_of1_core = out_proj_b @ fc1_w.T + fc1_b              # (2D,)
    w_of1 = jnp.zeros((D_MODEL, LANE), jnp.float32).at[:, :FFN_HIDDEN].set(w_of1_core)
    w_fc2 = jnp.zeros((LANE, D_MODEL), jnp.float32).at[:FFN_HIDDEN, :].set(fc2_w.T)

    b_slab = jnp.zeros((8, LANE), jnp.float32)
    b_slab = b_slab.at[0, :D_MODEL].set(bq * scale)
    b_slab = b_slab.at[1, :D_MODEL].set(bk)
    b_slab = b_slab.at[2, :D_MODEL].set(bv)
    b_slab = b_slab.at[3, :FFN_HIDDEN].set(b_of1_core)
    b_slab = b_slab.at[4, :D_MODEL].set(fc2_b)
    b_slab = b_slab.at[5, :D_MODEL].set(ln_g)
    b_slab = b_slab.at[6, :D_MODEL].set(ln_b)
    return w_qkv, w_of1, w_fc2, b_slab


def _reference(src_lnd, pos_lnd, torch_params):
    """Pure-JAX reference matching the PyTorch module semantics."""
    (in_w, in_b, out_w, out_b, fc1_w, fc1_b, fc2_w, fc2_b, g, beta) = torch_params
    L, N, D = src_lnd.shape
    qk = src_lnd + pos_lnd
    wq, wk, wv = jnp.split(in_w, 3, axis=0)
    bq, bk, bv = jnp.split(in_b, 3)
    q = qk @ wq.T + bq
    k = qk @ wk.T + bk
    v = src_lnd @ wv.T + bv

    def heads(x):
        return jnp.transpose(x.reshape(L, N, NHEAD, HEAD_DIM), (1, 2, 0, 3))

    qh, kh, vh = heads(q), heads(k), heads(v)
    s = jnp.einsum('nhld,nhmd->nhlm', qh, kh) / math.sqrt(HEAD_DIM)
    p = jax.nn.softmax(s, axis=-1)
    o = jnp.einsum('nhlm,nhmd->nhld', p, vh)
    o = jnp.transpose(o, (2, 0, 1, 3)).reshape(L, N, D)
    attn = o @ out_w.T + out_b
    h1 = jnp.maximum(attn @ fc1_w.T + fc1_b, 0.0)
    src2 = h1 @ fc2_w.T + fc2_b
    y = src2 + src_lnd
    mean = jnp.mean(y, -1, keepdims=True)
    var = jnp.mean((y - mean) ** 2, -1, keepdims=True)
    return (y - mean) / jnp.sqrt(var + LN_EPS) * g + beta


if __name__ == "__main__":
    key = jax.random.PRNGKey(0)
    ks = jax.random.split(key, 12)

    # Inputs in PyTorch's (L, N, E) layout.
    src_lnd = jax.random.normal(ks[0], (SEQ, BATCH, D_MODEL), jnp.float32)
    pos_lnd = jax.random.normal(ks[1], (SEQ, BATCH, D_MODEL), jnp.float32)

    def init(k, shape, scale=0.1):
        return scale * jax.random.normal(k, shape, jnp.float32)

    # Parameters in PyTorch shapes (deterministic synthetic init).
    in_proj_w = init(ks[2], (3 * D_MODEL, D_MODEL))
    in_proj_b = init(ks[3], (3 * D_MODEL,))
    out_proj_w = init(ks[4], (D_MODEL, D_MODEL))
    out_proj_b = init(ks[5], (D_MODEL,))
    fc1_w = init(ks[6], (FFN_HIDDEN, D_MODEL))
    fc1_b = init(ks[7], (FFN_HIDDEN,))
    fc2_w = init(ks[8], (D_MODEL, FFN_HIDDEN))
    fc2_b = init(ks[9], (D_MODEL,))
    ln_g = jnp.ones((D_MODEL,), jnp.float32)
    ln_b = jnp.zeros((D_MODEL,), jnp.float32)

    w_qkv, w_of1, w_fc2, b_slab = pack_params(
        in_proj_w, in_proj_b, out_proj_w, out_proj_b,
        fc1_w, fc1_b, fc2_w, fc2_b, ln_g, ln_b)

    # Layout glue: PyTorch (L, N, E) -> flattened batch-major (B*L, D).
    src_flat = jnp.transpose(src_lnd, (1, 0, 2)).reshape(BL, D_MODEL)
    pos_flat = jnp.transpose(pos_lnd, (1, 0, 2)).reshape(BL, D_MODEL)

    out_bld = transformer_encoder_layer(src_flat, pos_flat,
                                        w_qkv, w_of1, w_fc2, b_slab)
    out_lnd = jnp.transpose(out_bld, (1, 0, 2))
    jax.block_until_ready(out_lnd)

    ref = _reference(src_lnd, pos_lnd,
                     (in_proj_w, in_proj_b, out_proj_w, out_proj_b,
                      fc1_w, fc1_b, fc2_w, fc2_b, ln_g, ln_b))
    # Tolerance accounts for the host-side out_proj->fc1 fold (reassociation)
    # and the EUP approximate reciprocal in the softmax; any structural error
    # would produce O(1) differences.
    assert jnp.allclose(out_lnd, ref, atol=2e-3, rtol=2e-3), "mismatch vs reference"

    print("KERNEL_OK")
</pallas_src>

<mosaic_0001>
module attributes {stable_mosaic.version = 11 : i64} {
  func.func @encoder_layer_kernel(%arg0: i32, %arg1: memref<16x32xf32, #tpu.memory_space<vmem>>, %arg2: memref<16x32xf32, #tpu.memory_space<vmem>>, %arg3: memref<32x384xf32, #tpu.memory_space<vmem>>, %arg4: memref<32x128xf32, #tpu.memory_space<vmem>>, %arg5: memref<128x32xf32, #tpu.memory_space<vmem>>, %arg6: memref<8x128xf32, #tpu.memory_space<vmem>>, %arg7: memref<16x32xf32, #tpu.memory_space<vmem>>) attributes {dimension_semantics = [#tpu.dimension_semantics<arbitrary>], iteration_bounds = array<i64: 1>, scalar_prefetch = 0 : i64, scratch_operands = 0 : i64, tpu.core_type = #tpu.core_type<tc>, window_params = [{pipeline_mode = #tpu.pipeline_mode<synchronous>, transform_indices = @transform_0, window_bounds = array<i64: 16, 32>}, {pipeline_mode = #tpu.pipeline_mode<synchronous>, transform_indices = @transform_1, window_bounds = array<i64: 16, 32>}, {pipeline_mode = #tpu.pipeline_mode<synchronous>, transform_indices = @transform_2, window_bounds = array<i64: 32, 384>}, {pipeline_mode = #tpu.pipeline_mode<synchronous>, transform_indices = @transform_3, window_bounds = array<i64: 32, 128>}, {pipeline_mode = #tpu.pipeline_mode<synchronous>, transform_indices = @transform_4, window_bounds = array<i64: 128, 32>}, {pipeline_mode = #tpu.pipeline_mode<synchronous>, transform_indices = @transform_5, window_bounds = array<i64: 8, 128>}, {pipeline_mode = #tpu.pipeline_mode<synchronous>, transform_indices = @transform_6, window_bounds = array<i64: 16, 32>}]} {
    %c0 = arith.constant 0 : index
    %c0_0 = arith.constant 0 : index
    %0 = vector.load %arg1[%c0, %c0_0] : memref<16x32xf32, #tpu.memory_space<vmem>>, vector<16x32xf32>
    %c0_1 = arith.constant 0 : index
    %c0_2 = arith.constant 0 : index
    %1 = vector.load %arg2[%c0_1, %c0_2] : memref<16x32xf32, #tpu.memory_space<vmem>>, vector<16x32xf32>
    %2 = arith.addf %0, %1 : vector<16x32xf32>
    %c0_3 = arith.constant 0 : index
    %c0_4 = arith.constant 0 : index
    %3 = vector.load %arg6[%c0_3, %c0_4] : memref<8x128xf32, #tpu.memory_space<vmem>>, vector<8x128xf32>
    %4 = tpu.concatenate %2, %0 in 0 : vector<16x32xf32>, vector<16x32xf32> -> vector<32x32xf32>
    %c0_5 = arith.constant 0 : index
    %c0_6 = arith.constant 0 : index
    %5 = vector.load %arg3[%c0_5, %c0_6] : memref<32x384xf32, #tpu.memory_space<vmem>>, vector<32x384xf32>
    %cst = arith.constant dense<0.000000e+00> : vector<32x384xf32>
    %6 = tpu.matmul %4, %5, %cst {dimension_numbers = #tpu.dot_dimension_numbers<[1], [0], [0], [1], [0, 0, 1, 1], [], []>} : vector<32x32xf32>, vector<32x384xf32>, vector<32x384xf32> -> vector<32x384xf32>
    %7 = vector.extract_strided_slice %6 {offsets = [0, 0], sizes = [16, 32], strides = [1, 1]} : vector<32x384xf32> to vector<16x32xf32>
    %8 = vector.extract_strided_slice %3 {offsets = [0, 0], sizes = [1, 32], strides = [1, 1]} : vector<8x128xf32> to vector<1x32xf32>
    %9 = vector.broadcast %8 : vector<1x32xf32> to vector<16x32xf32>
    %10 = arith.addf %7, %9 : vector<16x32xf32>
    %11 = vector.extract_strided_slice %6 {offsets = [0, 128], sizes = [16, 32], strides = [1, 1]} : vector<32x384xf32> to vector<16x32xf32>
    %12 = vector.extract_strided_slice %3 {offsets = [1, 0], sizes = [1, 32], strides = [1, 1]} : vector<8x128xf32> to vector<1x32xf32>
    %13 = vector.broadcast %12 : vector<1x32xf32> to vector<16x32xf32>
    %14 = arith.addf %11, %13 : vector<16x32xf32>
    %15 = vector.extract_strided_slice %6 {offsets = [16, 256], sizes = [16, 32], strides = [1, 1]} : vector<32x384xf32> to vector<16x32xf32>
    %16 = vector.extract_strided_slice %3 {offsets = [2, 0], sizes = [1, 32], strides = [1, 1]} : vector<8x128xf32> to vector<1x32xf32>
    %17 = vector.broadcast %16 : vector<1x32xf32> to vector<16x32xf32>
    %18 = arith.addf %15, %17 : vector<16x32xf32>
    %19 = vector.shape_cast %10 : vector<16x32xf32> to vector<2x8x4x8xf32>
    %20 = tpu.transpose %19, [0, 2, 1, 3] : vector<2x8x4x8xf32> -> vector<2x4x8x8xf32>
    %21 = vector.shape_cast %20 : vector<2x4x8x8xf32> to vector<8x8x8xf32>
    %22 = vector.shape_cast %14 : vector<16x32xf32> to vector<2x8x4x8xf32>
    %23 = tpu.transpose %22, [0, 2, 1, 3] : vector<2x8x4x8xf32> -> vector<2x4x8x8xf32>
    %24 = vector.shape_cast %23 : vector<2x4x8x8xf32> to vector<8x8x8xf32>
    %25 = vector.shape_cast %18 : vector<16x32xf32> to vector<2x8x4x8xf32>
    %26 = tpu.transpose %25, [0, 2, 1, 3] : vector<2x8x4x8xf32> -> vector<2x4x8x8xf32>
    %27 = vector.shape_cast %26 : vector<2x4x8x8xf32> to vector<8x8x8xf32>
    "tpu.trace_start"() <{level = 10 : i32, message = "nld,nmd->nlm"}> : () -> ()
    %cst_7 = arith.constant dense<0.000000e+00> : vector<8x8x8xf32>
    %28 = tpu.matmul %21, %24, %cst_7 {dimension_numbers = #tpu.dot_dimension_numbers<[2], [2], [1], [1], [0, 0, 0, 1, 1, 1], [0], [0]>} : vector<8x8x8xf32>, vector<8x8x8xf32>, vector<8x8x8xf32> -> vector<8x8x8xf32>
    "tpu.trace_stop"() : () -> ()
    %cst_8 = arith.constant dense<0xFF800000> : vector<8x8xf32>
    %29 = vector.multi_reduction <maximumf>, %28, %cst_8 [2] : vector<8x8x8xf32> to vector<8x8xf32>
    %30 = vector.shape_cast %29 : vector<8x8xf32> to vector<8x8x1xf32>
    %31 = vector.broadcast %30 : vector<8x8x1xf32> to vector<8x8x8xf32>
    %32 = arith.subf %28, %31 : vector<8x8x8xf32>
    %33 = math.exp %32 : vector<8x8x8xf32>
    %cst_9 = arith.constant dense<0.000000e+00> : vector<8x8xf32>
    %34 = vector.multi_reduction <add>, %33, %cst_9 [2] : vector<8x8x8xf32> to vector<8x8xf32>
    %35 = vector.shape_cast %34 : vector<8x8xf32> to vector<8x8x1xf32>
    %36 = tpu.reciprocal %35 {approx = true} : vector<8x8x1xf32> -> vector<8x8x1xf32>
    %37 = vector.broadcast %36 : vector<8x8x1xf32> to vector<8x8x8xf32>
    %38 = arith.mulf %33, %37 : vector<8x8x8xf32>
    "tpu.trace_start"() <{level = 10 : i32, message = "nlm,nmd->nld"}> : () -> ()
    %cst_10 = arith.constant dense<0.000000e+00> : vector<8x8x8xf32>
    %39 = tpu.matmul %38, %27, %cst_10 {dimension_numbers = #tpu.dot_dimension_numbers<[2], [1], [1], [2], [0, 0, 0, 1, 1, 2], [0], [0]>} : vector<8x8x8xf32>, vector<8x8x8xf32>, vector<8x8x8xf32> -> vector<8x8x8xf32>
    "tpu.trace_stop"() : () -> ()
    %40 = vector.shape_cast %39 : vector<8x8x8xf32> to vector<2x4x8x8xf32>
    %41 = tpu.transpose %40, [0, 2, 1, 3] : vector<2x4x8x8xf32> -> vector<2x8x4x8xf32>
    %42 = vector.shape_cast %41 : vector<2x8x4x8xf32> to vector<16x32xf32>
    %c0_11 = arith.constant 0 : index
    %c0_12 = arith.constant 0 : index
    %43 = vector.load %arg4[%c0_11, %c0_12] : memref<32x128xf32, #tpu.memory_space<vmem>>, vector<32x128xf32>
    %cst_13 = arith.constant dense<0.000000e+00> : vector<16x128xf32>
    %44 = tpu.matmul %42, %43, %cst_13 {dimension_numbers = #tpu.dot_dimension_numbers<[1], [0], [0], [1], [0, 0, 1, 1], [], []>} : vector<16x32xf32>, vector<32x128xf32>, vector<16x128xf32> -> vector<16x128xf32>
    %45 = vector.extract_strided_slice %3 {offsets = [3, 0], sizes = [1, 128], strides = [1, 1]} : vector<8x128xf32> to vector<1x128xf32>
    %46 = vector.broadcast %45 : vector<1x128xf32> to vector<16x128xf32>
    %47 = arith.addf %44, %46 : vector<16x128xf32>
    %cst_14 = arith.constant 0.000000e+00 : f32
    %48 = vector.broadcast %cst_14 : f32 to vector<16x128xf32>
    %49 = arith.maximumf %47, %48 : vector<16x128xf32>
    %c0_15 = arith.constant 0 : index
    %c0_16 = arith.constant 0 : index
    %50 = vector.load %arg5[%c0_15, %c0_16] : memref<128x32xf32, #tpu.memory_space<vmem>>, vector<128x32xf32>
    %cst_17 = arith.constant dense<0.000000e+00> : vector<16x32xf32>
    %51 = tpu.matmul %49, %50, %cst_17 {dimension_numbers = #tpu.dot_dimension_numbers<[1], [0], [0], [1], [0, 0, 1, 1], [], []>} : vector<16x128xf32>, vector<128x32xf32>, vector<16x32xf32> -> vector<16x32xf32>
    %52 = vector.extract_strided_slice %3 {offsets = [4, 0], sizes = [1, 32], strides = [1, 1]} : vector<8x128xf32> to vector<1x32xf32>
    %53 = vector.broadcast %52 : vector<1x32xf32> to vector<16x32xf32>
    %54 = arith.addf %51, %53 : vector<16x32xf32>
    %55 = arith.addf %54, %0 : vector<16x32xf32>
    %cst_18 = arith.constant dense<0.000000e+00> : vector<16xf32>
    %56 = vector.multi_reduction <add>, %55, %cst_18 [1] : vector<16x32xf32> to vector<16xf32>
    %57 = vector.shape_cast %56 : vector<16xf32> to vector<16x1xf32>
    %cst_19 = arith.constant 3.200000e+01 : f32
    %58 = vector.broadcast %cst_19 : f32 to vector<16x1xf32>
    %59 = arith.divf %57, %58 : vector<16x1xf32>
    %60 = vector.broadcast %59 : vector<16x1xf32> to vector<16x32xf32>
    %61 = arith.subf %55, %60 : vector<16x32xf32>
    %62 = arith.mulf %61, %61 : vector<16x32xf32>
    %cst_20 = arith.constant dense<0.000000e+00> : vector<16xf32>
    %63 = vector.multi_reduction <add>, %62, %cst_20 [1] : vector<16x32xf32> to vector<16xf32>
    %64 = vector.shape_cast %63 : vector<16xf32> to vector<16x1xf32>
    %cst_21 = arith.constant 3.200000e+01 : f32
    %65 = vector.broadcast %cst_21 : f32 to vector<16x1xf32>
    %66 = arith.divf %64, %65 : vector<16x1xf32>
    %67 = vector.broadcast %59 : vector<16x1xf32> to vector<16x32xf32>
    %68 = arith.subf %55, %67 : vector<16x32xf32>
    %cst_22 = arith.constant 9.99999974E-6 : f32
    %69 = vector.broadcast %cst_22 : f32 to vector<16x1xf32>
    %70 = arith.addf %66, %69 : vector<16x1xf32>
    %71 = math.rsqrt %70 : vector<16x1xf32>
    %72 = vector.broadcast %71 : vector<16x1xf32> to vector<16x32xf32>
    %73 = arith.mulf %68, %72 : vector<16x32xf32>
    %74 = vector.extract_strided_slice %3 {offsets = [5, 0], sizes = [1, 32], strides = [1, 1]} : vector<8x128xf32> to vector<1x32xf32>
    %75 = vector.broadcast %74 : vector<1x32xf32> to vector<16x32xf32>
    %76 = arith.mulf %73, %75 : vector<16x32xf32>
    %77 = vector.extract_strided_slice %3 {offsets = [6, 0], sizes = [1, 32], strides = [1, 1]} : vector<8x128xf32> to vector<1x32xf32>
    %78 = vector.broadcast %77 : vector<1x32xf32> to vector<16x32xf32>
    %79 = arith.addf %76, %78 : vector<16x32xf32>
    %c0_23 = arith.constant 0 : index
    %c0_24 = arith.constant 0 : index
    %80 = vector.load %arg7[%c0_23, %c0_24] : memref<16x32xf32, #tpu.memory_space<vmem>>, vector<16x32xf32>
    tpu.vector_store %arg7[%c0_23, %c0_24], %79 {strides = array<i32>} : memref<16x32xf32, #tpu.memory_space<vmem>>, vector<16x32xf32>,
    return
  }
  func.func @transform_0(%arg0: i32) -> (i32, i32) {
    %c0_i32 = arith.constant 0 : i32
    %c0_i32_0 = arith.constant 0 : i32
    %c0_i32_1 = arith.constant 0 : i32
    return %c0_i32, %c0_i32_0 : i32, i32
  }
  func.func @transform_1(%arg0: i32) -> (i32, i32) {
    %c0_i32 = arith.constant 0 : i32
    %c0_i32_0 = arith.constant 0 : i32
    %c0_i32_1 = arith.constant 0 : i32
    return %c0_i32, %c0_i32_0 : i32, i32
  }
  func.func @transform_2(%arg0: i32) -> (i32, i32) {
    %c0_i32 = arith.constant 0 : i32
    %c0_i32_0 = arith.constant 0 : i32
    %c0_i32_1 = arith.constant 0 : i32
    return %c0_i32, %c0_i32_0 : i32, i32
  }
  func.func @transform_3(%arg0: i32) -> (i32, i32) {
    %c0_i32 = arith.constant 0 : i32
    %c0_i32_0 = arith.constant 0 : i32
    %c0_i32_1 = arith.constant 0 : i32
    return %c0_i32, %c0_i32_0 : i32, i32
  }
  func.func @transform_4(%arg0: i32) -> (i32, i32) {
    %c0_i32 = arith.constant 0 : i32
    %c0_i32_0 = arith.constant 0 : i32
    %c0_i32_1 = arith.constant 0 : i32
    return %c0_i32, %c0_i32_0 : i32, i32
  }
  func.func @transform_5(%arg0: i32) -> (i32, i32) {
    %c0_i32 = arith.constant 0 : i32
    %c0_i32_0 = arith.constant 0 : i32
    %c0_i32_1 = arith.constant 0 : i32
    return %c0_i32, %c0_i32_0 : i32, i32
  }
  func.func @transform_6(%arg0: i32) -> (i32, i32) {
    %c0_i32 = arith.constant 0 : i32
    %c0_i32_0 = arith.constant 0 : i32
    %c0_i32_1 = arith.constant 0 : i32
    return %c0_i32, %c0_i32_0 : i32, i32
  }
}

</mosaic_0001>

<llo_original>
// kernel: tpu_custom_call.1
$region0: #{tpu_custom_call.1}
  #allocation0 [shape = 'u32[]', space=smem, size = 0x4, offset = 0x4, fixed_abs, tag = 'smem constant byte address 0x4 - core index']
  #allocation1 [shape = 'u32[72,128]{1,0:T(1,128)}', space=vmem, size = 0x9000, scoped, tag = 'internal scratch']
  %s0 = inlined_call_operand.vmem [shape: f32[16,32], index: 0, kind: input, shape index: {}]
  %s1 = inlined_call_operand.vmem [shape: f32[16,32], index: 1, kind: input, shape index: {}]
  %s2 = inlined_call_operand.vmem [shape: f32[32,384], index: 2, kind: input, shape index: {}]
  %s3 = inlined_call_operand.vmem [shape: f32[32,128], index: 3, kind: input, shape index: {}]
  %s4 = inlined_call_operand.vmem [shape: f32[128,32], index: 4, kind: input, shape index: {}]
  %s5 = inlined_call_operand.hbm [shape: f32[8,128], index: 5, kind: input, shape index: {}]
  %s6 = inlined_call_operand.hbm [shape: f32[16,32], index: 6, kind: output, shape index: {}]
  %s7 = sld [smem:[#allocation0]]
  $region38: #{tpu_custom_call.1} parent=0
    _
  %s9 = ssub.s32 1, %s7
  %s10 = scalar_select 0, %s9, %s7
  $region1: #{tpu_custom_call.1} parent=0
    #allocation2 [shape = 'u8[4096]{0}', space=vmem, size = 0x1000, scoped, tag = 'input window, operand 5, single buffered']
    #allocation3 [shape = 's32[1]{0}', space=sflag, size = 0x4, scoped, tag = 'scoped memory for tpu_custom_call.1']
    #allocation4 [shape = 's32[1]{0}', space=sflag, size = 0x4, scoped, tag = 'scoped memory for tpu_custom_call.1']
    #allocation5 [shape = 'u8[8192]{0}', space=vmem, size = 0x2000, scoped, tag = 'output window, operand 0, single buffered']
    %11 = vsyncpa [#allocation3], 0
    %12 = vsyncpa [#allocation4], 0
    // Predicated region
    $region2: #{tpu_custom_call.1} parent=1 // pred_check
      _
    $region3: #{tpu_custom_call.1} parent=1 // pred_check_branch
      %14 = sbr.rel (0) target = $region5
    $region4: #{tpu_custom_call.1} parent=1 // pred_region
      _
    $region5: #{tpu_custom_call.1} parent=1 // pred_fallthru
      _
    // Predicated region
    $region6: #{tpu_custom_call.1} parent=1 // pred_check
      _
    $region7: #{tpu_custom_call.1} parent=1 // pred_check_branch
      %16 = sbr.rel (0) target = $region9
    $region8: #{tpu_custom_call.1} parent=1 // pred_region
      _
    $region9: #{tpu_custom_call.1} parent=1 // pred_fallthru
      _
    // Predicated region
    $region10: #{tpu_custom_call.1} parent=1 // pred_check
      _
    $region11: #{tpu_custom_call.1} parent=1 // pred_check_branch
      %18 = sbr.rel (0) target = $region13
    $region12: #{tpu_custom_call.1} parent=1 // pred_region
      _
    $region13: #{tpu_custom_call.1} parent=1 // pred_fallthru
      _
    // Predicated region
    $region14: #{tpu_custom_call.1} parent=1 // pred_check
      _
    $region15: #{tpu_custom_call.1} parent=1 // pred_check_branch
      %20 = sbr.rel (0) target = $region17
    $region16: #{tpu_custom_call.1} parent=1 // pred_region
      _
    $region17: #{tpu_custom_call.1} parent=1 // pred_fallthru
      _
    // Predicated region
    $region18: #{tpu_custom_call.1} parent=1 // pred_check
      _
    $region19: #{tpu_custom_call.1} parent=1 // pred_check_branch
      %22 = sbr.rel (0) target = $region21
    $region20: #{tpu_custom_call.1} parent=1 // pred_region
      _
    $region21: #{tpu_custom_call.1} parent=1 // pred_fallthru
      _
    // Predicated region
    $region22: #{tpu_custom_call.1} parent=1 // pred_check
      _
    $region23: #{tpu_custom_call.1} parent=1 // pred_check_branch
      %24 = sbr.rel (0) target = $region25
    $region24: #{tpu_custom_call.1} parent=1 // pred_region
      %26 = vsyncadd [#allocation3], 0
      %s28 = sshll.u32 %s5, 4
      %s29 = int_to_ptr.hbm [resolvable:$true] %s28
      %s30 = sshll.u32 [#allocation2], 4
      %s31 = int_to_ptr.vmem [resolvable:$true] %s30
      %33 = dma.hbm_to_vmem [thread:$0]  %s29, 128, %s31, [#allocation3]
    $region25: #{tpu_custom_call.1} parent=1 // pred_fallthru
      _
    // Predicated region
    $region26: #{tpu_custom_call.1} parent=1 // pred_check
      _
    $region27: #{tpu_custom_call.1} parent=1 // pred_check_branch
      %35 = sbr.rel (0) target = $region29
    $region28: #{tpu_custom_call.1} parent=1 // pred_region
      %37 = dma.done [#allocation3], 128
    $region29: #{tpu_custom_call.1} parent=1 // pred_fallthru
      _
    %v38 = vld [vmem:[%s0] sm:$0xff]
    %v39 = vld [vmem:[%s0 + $0x8] sm:$0xff]
    %v40 = vld [vmem:[%s1] sm:$0xff]
    %v41 = vld [vmem:[%s1 + $0x8] sm:$0xff]
    %v42 = vadd.f32 %v38, %v40
    %v43 = vadd.f32 %v39, %v41
    %v44 = vld [vmem:[#allocation2] sm:$0xff]
    %v45 = vld [vmem:[%s2] sm:$0xff]
    %v46 = vld [vmem:[%s2 + $0x8] sm:$0xff]
    %v47 = vld [vmem:[%s2 + $0x10] sm:$0xff]
    %v48 = vld [vmem:[%s2 + $0x18] sm:$0xff]
    %v49 = vld [vmem:[%s2 + $0x20] sm:$0xff]
    %v50 = vld [vmem:[%s2 + $0x28] sm:$0xff]
    %v51 = vld [vmem:[%s2 + $0x30] sm:$0xff]
    %v52 = vld [vmem:[%s2 + $0x38] sm:$0xff]
    %v53 = vld [vmem:[%s2 + $0x40] sm:$0xff]
    %v54 = vld [vmem:[%s2 + $0x48] sm:$0xff]
    %v55 = vld [vmem:[%s2 + $0x50] sm:$0xff]
    %v56 = vld [vmem:[%s2 + $0x58] sm:$0xff]
    %vm57 = vcmask 261120
    %v59 = vsel %vm57, %v42, 0
    %v62 = vsel %vm57, %v43, 0
    %v65 = vsel %vm57, %v38, 0
    %v68 = vsel %vm57, %v39, 0
    %70 = vmatpush.msra.mxu0 0.0
    %71 = vmatpush.msra.mxu0 0.0
    %72 = vmatpush.msra.mxu0 0.0
    %73 = vmatpush.msra.mxu0 0.0
    %74 = vmatpush.msra.mxu0 0.0
    %75 = vmatpush.msra.mxu0 0.0
    %76 = vmatpush.msra.mxu0 0.0
    %77 = vmatpush.msra.mxu0 0.0
    %78 = vmatpush.msra.mxu0 0.0
    %79 = vmatpush.msra.mxu0 0.0
    %80 = vmatpush.msra.mxu0 0.0
    %81 = vmatpush.msra.mxu0 0.0
    %82 = vmatpush.msra.mxu0 %v54
    %83 = vmatpush.msra.mxu0 %v51
    %84 = vmatpush.msra.mxu0 %v48
    %85 = vmatpush.msra.mxu0 %v45
    %86 = vmatmul.f32.gmra.mxu0 %v59
    %v87 = vpop.f32.mrf.mxu0
    %v88 = vadd.f32 0.0, %v87
    %89 = vmatmul.f32.gmra.mxu0 %v62
    %v90 = vpop.f32.mrf.mxu0
    %v91 = vadd.f32 0.0, %v90
    %92 = vmatmul.f32.gmra.mxu0 %v65
    %v93 = vpop.f32.mrf.mxu0
    %94 = vmatmul.f32.gmra.mxu0 %v68
    %v95 = vpop.f32.mrf.mxu0
    %96 = vdwg.mxu0
    %97 = vmatpush.msra.mxu0 0.0
    %98 = vmatpush.msra.mxu0 0.0
    %99 = vmatpush.msra.mxu0 0.0
    %100 = vmatpush.msra.mxu0 0.0
    %101 = vmatpush.msra.mxu0 0.0
    %102 = vmatpush.msra.mxu0 0.0
    %103 = vmatpush.msra.mxu0 0.0
    %104 = vmatpush.msra.mxu0 0.0
    %105 = vmatpush.msra.mxu0 0.0
    %106 = vmatpush.msra.mxu0 0.0
    %107 = vmatpush.msra.mxu0 0.0
    %108 = vmatpush.msra.mxu0 0.0
    %109 = vmatpush.msra.mxu0 %v55
    %110 = vmatpush.msra.mxu0 %v52
    %111 = vmatpush.msra.mxu0 %v49
    %112 = vmatpush.msra.mxu0 %v46
    %113 = vmatmul.f32.gmra.mxu0 %v59
    %v114 = vpop.f32.mrf.mxu0
    %v115 = vadd.f32 0.0, %v114
    %116 = vmatmul.f32.gmra.mxu0 %v62
    %v117 = vpop.f32.mrf.mxu0
    %v118 = vadd.f32 0.0, %v117
    %119 = vmatmul.f32.gmra.mxu0 %v65
    %v120 = vpop.f32.mrf.mxu0
    %121 = vmatmul.f32.gmra.mxu0 %v68
    %v122 = vpop.f32.mrf.mxu0
    %123 = vdwg.mxu0
    %124 = vmatpush.msra.mxu0 0.0
    %125 = vmatpush.msra.mxu0 0.0
    %126 = vmatpush.msra.mxu0 0.0
    %127 = vmatpush.msra.mxu0 0.0
    %128 = vmatpush.msra.mxu0 0.0
    %129 = vmatpush.msra.mxu0 0.0
    %130 = vmatpush.msra.mxu0 0.0
    %131 = vmatpush.msra.mxu0 0.0
    %132 = vmatpush.msra.mxu0 0.0
    %133 = vmatpush.msra.mxu0 0.0
    %134 = vmatpush.msra.mxu0 0.0
    %135 = vmatpush.msra.mxu0 0.0
    %136 = vmatpush.msra.mxu0 %v56
    %137 = vmatpush.msra.mxu0 %v53
    %138 = vmatpush.msra.mxu0 %v50
    %139 = vmatpush.msra.mxu0 %v47
    %140 = vmatmul.f32.gmra.mxu0 %v59
    %v141 = vpop.f32.mrf.mxu0
    %142 = vmatmul.f32.gmra.mxu0 %v62
    %v143 = vpop.f32.mrf.mxu0
    %144 = vmatmul.f32.gmra.mxu0 %v65
    %v145 = vpop.f32.mrf.mxu0
    %v146 = vadd.f32 0.0, %v145
    %147 = vmatmul.f32.gmra.mxu0 %v68
    %v148 = vpop.f32.mrf.mxu0
    %v149 = vadd.f32 0.0, %v148
    %150 = vdwg.mxu0
    %v151 = vperm.slane %v44, 0
    %v152 = vadd.f32 %v88, %v151
    %v153 = vadd.f32 %v91, %v151
    %v154 = vperm.slane %v44, 1
    %v155 = vadd.f32 %v115, %v154
    %v156 = vadd.f32 %v118, %v154
    %v157 = vperm.slane %v44, 2
    %v158 = vadd.f32 %v146, %v157
    %v159 = vadd.f32 %v149, %v157
    %162 = vrot.lane.b32.xlu0 %v152, 120
    %v163 = vpop.permute.xlu0 %162
    %164 = vrot.lane.b32.xlu0 %v153, 120
    %v165 = vpop.permute.xlu0 %164
    %168 = vrot.lane.b32.xlu0 %v152, 112
    %v169 = vpop.permute.xlu0 %168
    %170 = vrot.lane.b32.xlu0 %v153, 112
    %v171 = vpop.permute.xlu0 %170
    %174 = vrot.lane.b32.xlu0 %v152, 104
    %v175 = vpop.permute.xlu0 %174
    %176 = vrot.lane.b32.xlu0 %v153, 104
    %v177 = vpop.permute.xlu0 %176
    %v180 = vrot.slane %v169, 4
    %vm181 = vcmask 1047556
    %v182 = vsel %vm181, %v180, %v152
    %v183 = vrot.slane %v152, 4
    %v184 = vsel %vm181, %v169, %v183
    %v186 = vunpack.c.l.s4 1983009808
    %v187 = vunpack.c.0.s8 %v186
    %v188 = vperm.slane %v182, %v187
    %v190 = vunpack.c.l.s4 1983009808
    %v191 = vunpack.c.0.s8 %v190
    %v192 = vperm.slane %v184, %v191
    %v193 = vrot.slane %v175, 4
    %v194 = vsel %vm181, %v193, %v163
    %v195 = vrot.slane %v163, 4
    %v196 = vsel %vm181, %v175, %v195
    %v198 = vunpack.c.l.s4 1983009808
    %v199 = vunpack.c.0.s8 %v198
    %v200 = vperm.slane %v194, %v199
    %v202 = vunpack.c.l.s4 1983009808
    %v203 = vunpack.c.0.s8 %v202
    %v204 = vperm.slane %v196, %v203
    %v205 = vrot.slane %v200, 4
    %v206 = vsel %vm181, %v205, %v188
    %v207 = vrot.slane %v188, 4
    %v208 = vsel %vm181, %v200, %v207
    %v210 = vunpack.c.l.s4 1934713408
    %v211 = vunpack.c.0.s8 %v210
    %v212 = vperm.slane %v206, %v211
    %v214 = vunpack.c.l.s4 1934713408
    %v215 = vunpack.c.0.s8 %v214
    %v216 = vperm.slane %v208, %v215
    %v217 = vrot.slane %v204, 4
    %v218 = vsel %vm181, %v217, %v192
    %v219 = vrot.slane %v192, 4
    %v220 = vsel %vm181, %v204, %v219
    %v222 = vunpack.c.l.s4 1934713408
    %v223 = vunpack.c.0.s8 %v222
    %v224 = vperm.slane %v218, %v223
    %v226 = vunpack.c.l.s4 1934713408
    %v227 = vunpack.c.0.s8 %v226
    %v228 = vperm.slane %v220, %v227
    %v229 = vrot.slane %v212, 4
    %v230 = vsel %vm181, 0.0, %v229
    %v231 = vrot.slane %v216, 4
    %v232 = vsel %vm181, 0.0, %v231
    %v233 = vrot.slane %v224, 4
    %v234 = vsel %vm181, 0.0, %v233
    %v235 = vrot.slane %v228, 4
    %v236 = vsel %vm181, 0.0, %v235
    %v237 = vrot.slane %v171, 4
    %v238 = vsel %vm181, %v237, %v153
    %v239 = vrot.slane %v153, 4
    %v240 = vsel %vm181, %v171, %v239
    %v242 = vunpack.c.l.s4 1983009808
    %v243 = vunpack.c.0.s8 %v242
    %v244 = vperm.slane %v238, %v243
    %v246 = vunpack.c.l.s4 1983009808
    %v247 = vunpack.c.0.s8 %v246
    %v248 = vperm.slane %v240, %v247
    %v249 = vrot.slane %v177, 4
    %v250 = vsel %vm181, %v249, %v165
    %v251 = vrot.slane %v165, 4
    %v252 = vsel %vm181, %v177, %v251
    %v254 = vunpack.c.l.s4 1983009808
    %v255 = vunpack.c.0.s8 %v254
    %v256 = vperm.slane %v250, %v255
    %v258 = vunpack.c.l.s4 1983009808
    %v259 = vunpack.c.0.s8 %v258
    %v260 = vperm.slane %v252, %v259
    %v261 = vrot.slane %v256, 4
    %v262 = vsel %vm181, %v261, %v244
    %v263 = vrot.slane %v244, 4
    %v264 = vsel %vm181, %v256, %v263
    %v266 = vunpack.c.l.s4 1934713408
    %v267 = vunpack.c.0.s8 %v266
    %v268 = vperm.slane %v262, %v267
    %v270 = vunpack.c.l.s4 1934713408
    %v271 = vunpack.c.0.s8 %v270
    %v272 = vperm.slane %v264, %v271
    %v273 = vrot.slane %v260, 4
    %v274 = vsel %vm181, %v273, %v248
    %v275 = vrot.slane %v248, 4
    %v276 = vsel %vm181, %v260, %v275
    %v278 = vunpack.c.l.s4 1934713408
    %v279 = vunpack.c.0.s8 %v278
    %v280 = vperm.slane %v274, %v279
    %v282 = vunpack.c.l.s4 1934713408
    %v283 = vunpack.c.0.s8 %v282
    %v284 = vperm.slane %v276, %v283
    %v285 = vrot.slane %v268, 4
    %v286 = vsel %vm181, 0.0, %v285
    %v287 = vrot.slane %v272, 4
    %v288 = vsel %vm181, 0.0, %v287
    %v289 = vrot.slane %v280, 4
    %v290 = vsel %vm181, 0.0, %v289
    %v291 = vrot.slane %v284, 4
    %v292 = vsel %vm181, 0.0, %v291
    %v293 = vsel %vm181, %v231, %v212
    %v295 = vunpack.c.l.s4 1983009808
    %v296 = vunpack.c.0.s8 %v295
    %v297 = vperm.slane %v293, %v296
    %v298 = vrot.slane %v232, 4
    %v299 = vsel %vm181, %v298, %v230
    %v301 = vunpack.c.l.s4 1983009808
    %v302 = vunpack.c.0.s8 %v301
    %v303 = vperm.slane %v299, %v302
    %v304 = vsel %vm181, %v235, %v224
    %v306 = vunpack.c.l.s4 1983009808
    %v307 = vunpack.c.0.s8 %v306
    %v308 = vperm.slane %v304, %v307
    %v309 = vrot.slane %v236, 4
    %v310 = vsel %vm181, %v309, %v234
    %v312 = vunpack.c.l.s4 1983009808
    %v313 = vunpack.c.0.s8 %v312
    %v314 = vperm.slane %v310, %v313
    %v315 = vrot.slane %v303, 4
    %v316 = vsel %vm181, %v315, %v297
    %v317 = vrot.slane %v297, 4
    %v318 = vsel %vm181, %v303, %v317
    %v320 = vunpack.c.l.s4 1934713408
    %v321 = vunpack.c.0.s8 %v320
    %v322 = vperm.slane %v316, %v321
    %v324 = vunpack.c.l.s4 1934713408
    %v325 = vunpack.c.0.s8 %v324
    %v326 = vperm.slane %v318, %v325
    %v327 = vrot.slane %v314, 4
    %v328 = vsel %vm181, %v327, %v308
    %v329 = vrot.slane %v308, 4
    %v330 = vsel %vm181, %v314, %v329
    %v332 = vunpack.c.l.s4 1934713408
    %v333 = vunpack.c.0.s8 %v332
    %v334 = vperm.slane %v328, %v333
    %v336 = vunpack.c.l.s4 1934713408
    %v337 = vunpack.c.0.s8 %v336
    %v338 = vperm.slane %v330, %v337
    %v339 = vrot.slane %v334, 4
    %v340 = vsel %vm181, %v339, %v322
    %v341 = vrot.slane %v322, 4
    %v342 = vsel %vm181, %v334, %v341
    %v343 = vrot.slane %v338, 4
    %v344 = vsel %vm181, %v343, %v326
    %v345 = vrot.slane %v326, 4
    %v346 = vsel %vm181, %v338, %v345
    %v347 = vsel %vm181, %v287, %v268
    %v349 = vunpack.c.l.s4 1983009808
    %v350 = vunpack.c.0.s8 %v349
    %v351 = vperm.slane %v347, %v350
    %v352 = vrot.slane %v288, 4
    %v353 = vsel %vm181, %v352, %v286
    %v355 = vunpack.c.l.s4 1983009808
    %v356 = vunpack.c.0.s8 %v355
    %v357 = vperm.slane %v353, %v356
    %v358 = vsel %vm181, %v291, %v280
    %v360 = vunpack.c.l.s4 1983009808
    %v361 = vunpack.c.0.s8 %v360
    %v362 = vperm.slane %v358, %v361
    %v363 = vrot.slane %v292, 4
    %v364 = vsel %vm181, %v363, %v290
    %v366 = vunpack.c.l.s4 1983009808
    %v367 = vunpack.c.0.s8 %v366
    %v368 = vperm.slane %v364, %v367
    %v369 = vrot.slane %v357, 4
    %v370 = vsel %vm181, %v369, %v351
    %v371 = vrot.slane %v351, 4
    %v372 = vsel %vm181, %v357, %v371
    %v374 = vunpack.c.l.s4 1934713408
    %v375 = vunpack.c.0.s8 %v374
    %v376 = vperm.slane %v370, %v375
    %v378 = vunpack.c.l.s4 1934713408
    %v379 = vunpack.c.0.s8 %v378
    %v380 = vperm.slane %v372, %v379
    %v381 = vrot.slane %v368, 4
    %v382 = vsel %vm181, %v381, %v362
    %v383 = vrot.slane %v362, 4
    %v384 = vsel %vm181, %v368, %v383
    %v386 = vunpack.c.l.s4 1934713408
    %v387 = vunpack.c.0.s8 %v386
    %v388 = vperm.slane %v382, %v387
    %v390 = vunpack.c.l.s4 1934713408
    %v391 = vunpack.c.0.s8 %v390
    %v392 = vperm.slane %v384, %v391
    %v393 = vrot.slane %v388, 4
    %v394 = vsel %vm181, %v393, %v376
    %v395 = vrot.slane %v376, 4
    %v396 = vsel %vm181, %v388, %v395
    %v397 = vrot.slane %v392, 4
    %v398 = vsel %vm181, %v397, %v380
    %v399 = vrot.slane %v380, 4
    %v400 = vsel %vm181, %v392, %v399
    %403 = vrot.lane.b32.xlu0 %v155, 120
    %v404 = vpop.permute.xlu0 %403
    %405 = vrot.lane.b32.xlu0 %v156, 120
    %v406 = vpop.permute.xlu0 %405
    %409 = vrot.lane.b32.xlu0 %v155, 112
    %v410 = vpop.permute.xlu0 %409
    %411 = vrot.lane.b32.xlu0 %v156, 112
    %v412 = vpop.permute.xlu0 %411
    %415 = vrot.lane.b32.xlu0 %v155, 104
    %v416 = vpop.permute.xlu0 %415
    %417 = vrot.lane.b32.xlu0 %v156, 104
    %v418 = vpop.permute.xlu0 %417
    %v421 = vrot.slane %v410, 4
    %v422 = vsel %vm181, %v421, %v155
    %v423 = vrot.slane %v155, 4
    %v424 = vsel %vm181, %v410, %v423
    %v426 = vunpack.c.l.s4 1983009808
    %v427 = vunpack.c.0.s8 %v426
    %v428 = vperm.slane %v422, %v427
    %v430 = vunpack.c.l.s4 1983009808
    %v431 = vunpack.c.0.s8 %v430
    %v432 = vperm.slane %v424, %v431
    %v433 = vrot.slane %v416, 4
    %v434 = vsel %vm181, %v433, %v404
    %v435 = vrot.slane %v404, 4
    %v436 = vsel %vm181, %v416, %v435
    %v438 = vunpack.c.l.s4 1983009808
    %v439 = vunpack.c.0.s8 %v438
    %v440 = vperm.slane %v434, %v439
    %v442 = vunpack.c.l.s4 1983009808
    %v443 = vunpack.c.0.s8 %v442
    %v444 = vperm.slane %v436, %v443
    %v445 = vrot.slane %v440, 4
    %v446 = vsel %vm181, %v445, %v428
    %v447 = vrot.slane %v428, 4
    %v448 = vsel %vm181, %v440, %v447
    %v450 = vunpack.c.l.s4 1934713408
    %v451 = vunpack.c.0.s8 %v450
    %v452 = vperm.slane %v446, %v451
    %v454 = vunpack.c.l.s4 1934713408
    %v455 = vunpack.c.0.s8 %v454
    %v456 = vperm.slane %v448, %v455
    %v457 = vrot.slane %v444, 4
    %v458 = vsel %vm181, %v457, %v432
    %v459 = vrot.slane %v432, 4
    %v460 = vsel %vm181, %v444, %v459
    %v462 = vunpack.c.l.s4 1934713408
    %v463 = vunpack.c.0.s8 %v462
    %v464 = vperm.slane %v458, %v463
    %v466 = vunpack.c.l.s4 1934713408
    %v467 = vunpack.c.0.s8 %v466
    %v468 = vperm.slane %v460, %v467
    %v469 = vrot.slane %v452, 4
    %v470 = vsel %vm181, 0.0, %v469
    %v471 = vrot.slane %v456, 4
    %v472 = vsel %vm181, 0.0, %v471
    %v473 = vrot.slane %v464, 4
    %v474 = vsel %vm181, 0.0, %v473
    %v475 = vrot.slane %v468, 4
    %v476 = vsel %vm181, 0.0, %v475
    %v477 = vrot.slane %v412, 4
    %v478 = vsel %vm181, %v477, %v156
    %v479 = vrot.slane %v156, 4
    %v480 = vsel %vm181, %v412, %v479
    %v482 = vunpack.c.l.s4 1983009808
    %v483 = vunpack.c.0.s8 %v482
    %v484 = vperm.slane %v478, %v483
    %v486 = vunpack.c.l.s4 1983009808
    %v487 = vunpack.c.0.s8 %v486
    %v488 = vperm.slane %v480, %v487
    %v489 = vrot.slane %v418, 4
    %v490 = vsel %vm181, %v489, %v406
    %v491 = vrot.slane %v406, 4
    %v492 = vsel %vm181, %v418, %v491
    %v494 = vunpack.c.l.s4 1983009808
    %v495 = vunpack.c.0.s8 %v494
    %v496 = vperm.slane %v490, %v495
    %v498 = vunpack.c.l.s4 1983009808
    %v499 = vunpack.c.0.s8 %v498
    %v500 = vperm.slane %v492, %v499
    %v501 = vrot.slane %v496, 4
    %v502 = vsel %vm181, %v501, %v484
    %v503 = vrot.slane %v484, 4
    %v504 = vsel %vm181, %v496, %v503
    %v506 = vunpack.c.l.s4 1934713408
    %v507 = vunpack.c.0.s8 %v506
    %v508 = vperm.slane %v502, %v507
    %v510 = vunpack.c.l.s4 1934713408
    %v511 = vunpack.c.0.s8 %v510
    %v512 = vperm.slane %v504, %v511
    %v513 = vrot.slane %v500, 4
    %v514 = vsel %vm181, %v513, %v488
    %v515 = vrot.slane %v488, 4
    %v516 = vsel %vm181, %v500, %v515
    %v518 = vunpack.c.l.s4 1934713408
    %v519 = vunpack.c.0.s8 %v518
    %v520 = vperm.slane %v514, %v519
    %v522 = vunpack.c.l.s4 1934713408
    %v523 = vunpack.c.0.s8 %v522
    %v524 = vperm.slane %v516, %v523
    %v525 = vrot.slane %v508, 4
    %v526 = vsel %vm181, 0.0, %v525
    %v527 = vrot.slane %v512, 4
    %v528 = vsel %vm181, 0.0, %v527
    %v529 = vrot.slane %v520, 4
    %v530 = vsel %vm181, 0.0, %v529
    %v531 = vrot.slane %v524, 4
    %v532 = vsel %vm181, 0.0, %v531
    %v533 = vsel %vm181, %v471, %v452
    %v535 = vunpack.c.l.s4 1983009808
    %v536 = vunpack.c.0.s8 %v535
    %v537 = vperm.slane %v533, %v536
    %v538 = vrot.slane %v472, 4
    %v539 = vsel %vm181, %v538, %v470
    %v541 = vunpack.c.l.s4 1983009808
    %v542 = vunpack.c.0.s8 %v541
    %v543 = vperm.slane %v539, %v542
    %v544 = vsel %vm181, %v475, %v464
    %v546 = vunpack.c.l.s4 1983009808
    %v547 = vunpack.c.0.s8 %v546
    %v548 = vperm.slane %v544, %v547
    %v549 = vrot.slane %v476, 4
    %v550 = vsel %vm181, %v549, %v474
    %v552 = vunpack.c.l.s4 1983009808
    %v553 = vunpack.c.0.s8 %v552
    %v554 = vperm.slane %v550, %v553
    %v555 = vrot.slane %v543, 4
    %v556 = vsel %vm181, %v555, %v537
    %v557 = vrot.slane %v537, 4
    %v558 = vsel %vm181, %v543, %v557
    %v560 = vunpack.c.l.s4 1934713408
    %v561 = vunpack.c.0.s8 %v560
    %v562 = vperm.slane %v556, %v561
    %v564 = vunpack.c.l.s4 1934713408
    %v565 = vunpack.c.0.s8 %v564
    %v566 = vperm.slane %v558, %v565
    %v567 = vrot.slane %v554, 4
    %v568 = vsel %vm181, %v567, %v548
    %v569 = vrot.slane %v548, 4
    %v570 = vsel %vm181, %v554, %v569
    %v572 = vunpack.c.l.s4 1934713408
    %v573 = vunpack.c.0.s8 %v572
    %v574 = vperm.slane %v568, %v573
    %v576 = vunpack.c.l.s4 1934713408
    %v577 = vunpack.c.0.s8 %v576
    %v578 = vperm.slane %v570, %v577
    %v579 = vrot.slane %v574, 4
    %v580 = vsel %vm181, %v579, %v562
    %v581 = vrot.slane %v562, 4
    %v582 = vsel %vm181, %v574, %v581
    %v583 = vrot.slane %v578, 4
    %v584 = vsel %vm181, %v583, %v566
    %v585 = vrot.slane %v566, 4
    %v586 = vsel %vm181, %v578, %v585
    %v587 = vsel %vm181, %v527, %v508
    %v589 = vunpack.c.l.s4 1983009808
    %v590 = vunpack.c.0.s8 %v589
    %v591 = vperm.slane %v587, %v590
    %v592 = vrot.slane %v528, 4
    %v593 = vsel %vm181, %v592, %v526
    %v595 = vunpack.c.l.s4 1983009808
    %v596 = vunpack.c.0.s8 %v595
    %v597 = vperm.slane %v593, %v596
    %v598 = vsel %vm181, %v531, %v520
    %v600 = vunpack.c.l.s4 1983009808
    %v601 = vunpack.c.0.s8 %v600
    %v602 = vperm.slane %v598, %v601
    %v603 = vrot.slane %v532, 4
    %v604 = vsel %vm181, %v603, %v530
    %v606 = vunpack.c.l.s4 1983009808
    %v607 = vunpack.c.0.s8 %v606
    %v608 = vperm.slane %v604, %v607
    %v609 = vrot.slane %v597, 4
    %v610 = vsel %vm181, %v609, %v591
    %v611 = vrot.slane %v591, 4
    %v612 = vsel %vm181, %v597, %v611
    %v614 = vunpack.c.l.s4 1934713408
    %v615 = vunpack.c.0.s8 %v614
    %v616 = vperm.slane %v610, %v615
    %v618 = vunpack.c.l.s4 1934713408
    %v619 = vunpack.c.0.s8 %v618
    %v620 = vperm.slane %v612, %v619
    %v621 = vrot.slane %v608, 4
    %v622 = vsel %vm181, %v621, %v602
    %v623 = vrot.slane %v602, 4
    %v624 = vsel %vm181, %v608, %v623
    %v626 = vunpack.c.l.s4 1934713408
    %v627 = vunpack.c.0.s8 %v626
    %v628 = vperm.slane %v622, %v627
    %v630 = vunpack.c.l.s4 1934713408
    %v631 = vunpack.c.0.s8 %v630
    %v632 = vperm.slane %v624, %v631
    %v633 = vrot.slane %v628, 4
    %v634 = vsel %vm181, %v633, %v616
    %v635 = vrot.slane %v616, 4
    %v636 = vsel %vm181, %v628, %v635
    %v637 = vrot.slane %v632, 4
    %v638 = vsel %vm181, %v637, %v620
    %v639 = vrot.slane %v620, 4
    %v640 = vsel %vm181, %v632, %v639
    %643 = vrot.lane.b32.xlu0 %v158, 120
    %v644 = vpop.permute.xlu0 %643
    %645 = vrot.lane.b32.xlu0 %v159, 120
    %v646 = vpop.permute.xlu0 %645
    %649 = vrot.lane.b32.xlu0 %v158, 112
    %v650 = vpop.permute.xlu0 %649
    %651 = vrot.lane.b32.xlu0 %v159, 112
    %v652 = vpop.permute.xlu0 %651
    %655 = vrot.lane.b32.xlu0 %v158, 104
    %v656 = vpop.permute.xlu0 %655
    %657 = vrot.lane.b32.xlu0 %v159, 104
    %v658 = vpop.permute.xlu0 %657
    %v661 = vrot.slane %v650, 4
    %v662 = vsel %vm181, %v661, %v158
    %v663 = vrot.slane %v158, 4
    %v664 = vsel %vm181, %v650, %v663
    %v666 = vunpack.c.l.s4 1983009808
    %v667 = vunpack.c.0.s8 %v666
    %v668 = vperm.slane %v662, %v667
    %v670 = vunpack.c.l.s4 1983009808
    %v671 = vunpack.c.0.s8 %v670
    %v672 = vperm.slane %v664, %v671
    %v673 = vrot.slane %v656, 4
    %v674 = vsel %vm181, %v673, %v644
    %v675 = vrot.slane %v644, 4
    %v676 = vsel %vm181, %v656, %v675
    %v678 = vunpack.c.l.s4 1983009808
    %v679 = vunpack.c.0.s8 %v678
    %v680 = vperm.slane %v674, %v679
    %v682 = vunpack.c.l.s4 1983009808
    %v683 = vunpack.c.0.s8 %v682
    %v684 = vperm.slane %v676, %v683
    %v685 = vrot.slane %v680, 4
    %v686 = vsel %vm181, %v685, %v668
    %v687 = vrot.slane %v668, 4
    %v688 = vsel %vm181, %v680, %v687
    %v690 = vunpack.c.l.s4 1934713408
    %v691 = vunpack.c.0.s8 %v690
    %v692 = vperm.slane %v686, %v691
    %v694 = vunpack.c.l.s4 1934713408
    %v695 = vunpack.c.0.s8 %v694
    %v696 = vperm.slane %v688, %v695
    %v697 = vrot.slane %v684, 4
    %v698 = vsel %vm181, %v697, %v672
    %v699 = vrot.slane %v672, 4
    %v700 = vsel %vm181, %v684, %v699
    %v702 = vunpack.c.l.s4 1934713408
    %v703 = vunpack.c.0.s8 %v702
    %v704 = vperm.slane %v698, %v703
    %v706 = vunpack.c.l.s4 1934713408
    %v707 = vunpack.c.0.s8 %v706
    %v708 = vperm.slane %v700, %v707
    %v709 = vrot.slane %v692, 4
    %v710 = vsel %vm181, 0.0, %v709
    %v711 = vrot.slane %v696, 4
    %v712 = vsel %vm181, 0.0, %v711
    %v713 = vrot.slane %v704, 4
    %v714 = vsel %vm181, 0.0, %v713
    %v715 = vrot.slane %v708, 4
    %v716 = vsel %vm181, 0.0, %v715
    %v717 = vrot.slane %v652, 4
    %v718 = vsel %vm181, %v717, %v159
    %v719 = vrot.slane %v159, 4
    %v720 = vsel %vm181, %v652, %v719
    %v722 = vunpack.c.l.s4 1983009808
    %v723 = vunpack.c.0.s8 %v722
    %v724 = vperm.slane %v718, %v723
    %v726 = vunpack.c.l.s4 1983009808
    %v727 = vunpack.c.0.s8 %v726
    %v728 = vperm.slane %v720, %v727
    %v729 = vrot.slane %v658, 4
    %v730 = vsel %vm181, %v729, %v646
    %v731 = vrot.slane %v646, 4
    %v732 = vsel %vm181, %v658, %v731
    %v734 = vunpack.c.l.s4 1983009808
    %v735 = vunpack.c.0.s8 %v734
    %v736 = vperm.slane %v730, %v735
    %v738 = vunpack.c.l.s4 1983009808
    %v739 = vunpack.c.0.s8 %v738
    %v740 = vperm.slane %v732, %v739
    %v741 = vrot.slane %v736, 4
    %v742 = vsel %vm181, %v741, %v724
    %v743 = vrot.slane %v724, 4
    %v744 = vsel %vm181, %v736, %v743
    %v746 = vunpack.c.l.s4 1934713408
    %v747 = vunpack.c.0.s8 %v746
    %v748 = vperm.slane %v742, %v747
    %v750 = vunpack.c.l.s4 1934713408
    %v751 = vunpack.c.0.s8 %v750
    %v752 = vperm.slane %v744, %v751
    %v753 = vrot.slane %v740, 4
    %v754 = vsel %vm181, %v753, %v728
    %v755 = vrot.slane %v728, 4
    %v756 = vsel %vm181, %v740, %v755
    %v758 = vunpack.c.l.s4 1934713408
    %v759 = vunpack.c.0.s8 %v758
    %v760 = vperm.slane %v754, %v759
    %v762 = vunpack.c.l.s4 1934713408
    %v763 = vunpack.c.0.s8 %v762
    %v764 = vperm.slane %v756, %v763
    %v765 = vrot.slane %v748, 4
    %v766 = vsel %vm181, 0.0, %v765
    %v767 = vrot.slane %v752, 4
    %v768 = vsel %vm181, 0.0, %v767
    %v769 = vrot.slane %v760, 4
    %v770 = vsel %vm181, 0.0, %v769
    %v771 = vrot.slane %v764, 4
    %v772 = vsel %vm181, 0.0, %v771
    %v773 = vsel %vm181, %v711, %v692
    %v775 = vunpack.c.l.s4 1983009808
    %v776 = vunpack.c.0.s8 %v775
    %v777 = vperm.slane %v773, %v776
    %v778 = vrot.slane %v712, 4
    %v779 = vsel %vm181, %v778, %v710
    %v781 = vunpack.c.l.s4 1983009808
    %v782 = vunpack.c.0.s8 %v781
    %v783 = vperm.slane %v779, %v782
    %v784 = vsel %vm181, %v715, %v704
    %v786 = vunpack.c.l.s4 1983009808
    %v787 = vunpack.c.0.s8 %v786
    %v788 = vperm.slane %v784, %v787
    %v789 = vrot.slane %v716, 4
    %v790 = vsel %vm181, %v789, %v714
    %v792 = vunpack.c.l.s4 1983009808
    %v793 = vunpack.c.0.s8 %v792
    %v794 = vperm.slane %v790, %v793
    %v795 = vrot.slane %v783, 4
    %v796 = vsel %vm181, %v795, %v777
    %v797 = vrot.slane %v777, 4
    %v798 = vsel %vm181, %v783, %v797
    %v800 = vunpack.c.l.s4 1934713408
    %v801 = vunpack.c.0.s8 %v800
    %v802 = vperm.slane %v796, %v801
    %v804 = vunpack.c.l.s4 1934713408
    %v805 = vunpack.c.0.s8 %v804
    %v806 = vperm.slane %v798, %v805
    %v807 = vrot.slane %v794, 4
    %v808 = vsel %vm181, %v807, %v788
    %v809 = vrot.slane %v788, 4
    %v810 = vsel %vm181, %v794, %v809
    %v812 = vunpack.c.l.s4 1934713408
    %v813 = vunpack.c.0.s8 %v812
    %v814 = vperm.slane %v808, %v813
    %v816 = vunpack.c.l.s4 1934713408
    %v817 = vunpack.c.0.s8 %v816
    %v818 = vperm.slane %v810, %v817
    %v819 = vrot.slane %v814, 4
    %v820 = vsel %vm181, %v819, %v802
    %v821 = vrot.slane %v802, 4
    %v822 = vsel %vm181, %v814, %v821
    %v823 = vrot.slane %v818, 4
    %v824 = vsel %vm181, %v823, %v806
    %v825 = vrot.slane %v806, 4
    %v826 = vsel %vm181, %v818, %v825
    %v827 = vsel %vm181, %v767, %v748
    %v829 = vunpack.c.l.s4 1983009808
    %v830 = vunpack.c.0.s8 %v829
    %v831 = vperm.slane %v827, %v830
    %v832 = vrot.slane %v768, 4
    %v833 = vsel %vm181, %v832, %v766
    %v835 = vunpack.c.l.s4 1983009808
    %v836 = vunpack.c.0.s8 %v835
    %v837 = vperm.slane %v833, %v836
    %v838 = vsel %vm181, %v771, %v760
    %v840 = vunpack.c.l.s4 1983009808
    %v841 = vunpack.c.0.s8 %v840
    %v842 = vperm.slane %v838, %v841
    %v843 = vrot.slane %v772, 4
    %v844 = vsel %vm181, %v843, %v770
    %v846 = vunpack.c.l.s4 1983009808
    %v847 = vunpack.c.0.s8 %v846
    %v848 = vperm.slane %v844, %v847
    %v849 = vrot.slane %v837, 4
    %v850 = vsel %vm181, %v849, %v831
    %v851 = vrot.slane %v831, 4
    %v852 = vsel %vm181, %v837, %v851
    %v854 = vunpack.c.l.s4 1934713408
    %v855 = vunpack.c.0.s8 %v854
    %v856 = vperm.slane %v850, %v855
    %v858 = vunpack.c.l.s4 1934713408
    %v859 = vunpack.c.0.s8 %v858
    %v860 = vperm.slane %v852, %v859
    %v861 = vrot.slane %v848, 4
    %v862 = vsel %vm181, %v861, %v842
    %v863 = vrot.slane %v842, 4
    %v864 = vsel %vm181, %v848, %v863
    %v866 = vunpack.c.l.s4 1934713408
    %v867 = vunpack.c.0.s8 %v866
    %v868 = vperm.slane %v862, %v867
    %v870 = vunpack.c.l.s4 1934713408
    %v871 = vunpack.c.0.s8 %v870
    %v872 = vperm.slane %v864, %v871
    %v873 = vrot.slane %v868, 4
    %v874 = vsel %vm181, %v873, %v856
    %v875 = vrot.slane %v856, 4
    %v876 = vsel %vm181, %v868, %v875
    %v877 = vrot.slane %v872, 4
    %v878 = vsel %vm181, %v877, %v860
    %v879 = vrot.slane %v860, 4
    %v880 = vsel %vm181, %v872, %v879
    %vm881 = vcmask 64512
    %v883 = vsel %vm881, %v340, 0
    %v886 = vsel %vm881, %v580, 0
    %888 = vmatpush.xpose.msra.mxu0 0.0
    %889 = vmatpush.xpose.msra.mxu0 0.0
    %890 = vmatpush.xpose.msra.mxu0 0.0
    %891 = vmatpush.xpose.msra.mxu0 0.0
    %892 = vmatpush.xpose.msra.mxu0 0.0
    %893 = vmatpush.xpose.msra.mxu0 0.0
    %894 = vmatpush.xpose.msra.mxu0 0.0
    %895 = vmatpush.xpose.msra.mxu0 0.0
    %896 = vmatpush.xpose.msra.mxu0 0.0
    %897 = vmatpush.xpose.msra.mxu0 0.0
    %898 = vmatpush.xpose.msra.mxu0 0.0
    %899 = vmatpush.xpose.msra.mxu0 0.0
    %900 = vmatpush.xpose.msra.mxu0 0.0
    %901 = vmatpush.xpose.msra.mxu0 0.0
    %902 = vmatpush.xpose.msra.mxu0 0.0
    %903 = vmatpush.xpose.msra.mxu0 %v886
    %904 = vmatmul.f32.gmra.mxu0 %v883
    %v905 = vpop.f32.mrf.mxu0
    %v906 = vadd.f32 0.0, %v905
    %907 = vdwg.mxu0
    %v909 = vsel %vm881, %v342, 0
    %v912 = vsel %vm881, %v582, 0
    %914 = vmatpush.xpose.msra.mxu0 0.0
    %915 = vmatpush.xpose.msra.mxu0 0.0
    %916 = vmatpush.xpose.msra.mxu0 0.0
    %917 = vmatpush.xpose.msra.mxu0 0.0
    %918 = vmatpush.xpose.msra.mxu0 0.0
    %919 = vmatpush.xpose.msra.mxu0 0.0
    %920 = vmatpush.xpose.msra.mxu0 0.0
    %921 = vmatpush.xpose.msra.mxu0 0.0
    %922 = vmatpush.xpose.msra.mxu0 0.0
    %923 = vmatpush.xpose.msra.mxu0 0.0
    %924 = vmatpush.xpose.msra.mxu0 0.0
    %925 = vmatpush.xpose.msra.mxu0 0.0
    %926 = vmatpush.xpose.msra.mxu0 0.0
    %927 = vmatpush.xpose.msra.mxu0 0.0
    %928 = vmatpush.xpose.msra.mxu0 0.0
    %929 = vmatpush.xpose.msra.mxu0 %v912
    %930 = vmatmul.f32.gmra.mxu0 %v909
    %v931 = vpop.f32.mrf.mxu0
    %v932 = vadd.f32 0.0, %v931
    %933 = vdwg.mxu0
    %v935 = vsel %vm881, %v344, 0
    %v938 = vsel %vm881, %v584, 0
    %940 = vmatpush.xpose.msra.mxu0 0.0
    %941 = vmatpush.xpose.msra.mxu0 0.0
    %942 = vmatpush.xpose.msra.mxu0 0.0
    %943 = vmatpush.xpose.msra.mxu0 0.0
    %944 = vmatpush.xpose.msra.mxu0 0.0
    %945 = vmatpush.xpose.msra.mxu0 0.0
    %946 = vmatpush.xpose.msra.mxu0 0.0
    %947 = vmatpush.xpose.msra.mxu0 0.0
    %948 = vmatpush.xpose.msra.mxu0 0.0
    %949 = vmatpush.xpose.msra.mxu0 0.0
    %950 = vmatpush.xpose.msra.mxu0 0.0
    %951 = vmatpush.xpose.msra.mxu0 0.0
    %952 = vmatpush.xpose.msra.mxu0 0.0
    %953 = vmatpush.xpose.msra.mxu0 0.0
    %954 = vmatpush.xpose.msra.mxu0 0.0
    %955 = vmatpush.xpose.msra.mxu0 %v938
    %956 = vmatmul.f32.gmra.mxu0 %v935
    %v957 = vpop.f32.mrf.mxu0
    %v958 = vadd.f32 0.0, %v957
    %959 = vdwg.mxu0
    %v961 = vsel %vm881, %v346, 0
    %v964 = vsel %vm881, %v586, 0
    %966 = vmatpush.xpose.msra.mxu0 0.0
    %967 = vmatpush.xpose.msra.mxu0 0.0
    %968 = vmatpush.xpose.msra.mxu0 0.0
    %969 = vmatpush.xpose.msra.mxu0 0.0
    %970 = vmatpush.xpose.msra.mxu0 0.0
    %971 = vmatpush.xpose.msra.mxu0 0.0
    %972 = vmatpush.xpose.msra.mxu0 0.0
    %973 = vmatpush.xpose.msra.mxu0 0.0
    %974 = vmatpush.xpose.msra.mxu0 0.0
    %975 = vmatpush.xpose.msra.mxu0 0.0
    %976 = vmatpush.xpose.msra.mxu0 0.0
    %977 = vmatpush.xpose.msra.mxu0 0.0
    %978 = vmatpush.xpose.msra.mxu0 0.0
    %979 = vmatpush.xpose.msra.mxu0 0.0
    %980 = vmatpush.xpose.msra.mxu0 0.0
    %981 = vmatpush.xpose.msra.mxu0 %v964
    %982 = vmatmul.f32.gmra.mxu0 %v961
    %v983 = vpop.f32.mrf.mxu0
    %v984 = vadd.f32 0.0, %v983
    %985 = vdwg.mxu0
    %v987 = vsel %vm881, %v394, 0
    %v990 = vsel %vm881, %v634, 0
    %992 = vmatpush.xpose.msra.mxu0 0.0
    %993 = vmatpush.xpose.msra.mxu0 0.0
    %994 = vmatpush.xpose.msra.mxu0 0.0
    %995 = vmatpush.xpose.msra.mxu0 0.0
    %996 = vmatpush.xpose.msra.mxu0 0.0
    %997 = vmatpush.xpose.msra.mxu0 0.0
    %998 = vmatpush.xpose.msra.mxu0 0.0
    %999 = vmatpush.xpose.msra.mxu0 0.0
    %1000 = vmatpush.xpose.msra.mxu0 0.0
    %1001 = vmatpush.xpose.msra.mxu0 0.0
    %1002 = vmatpush.xpose.msra.mxu0 0.0
    %1003 = vmatpush.xpose.msra.mxu0 0.0
    %1004 = vmatpush.xpose.msra.mxu0 0.0
    %1005 = vmatpush.xpose.msra.mxu0 0.0
    %1006 = vmatpush.xpose.msra.mxu0 0.0
    %1007 = vmatpush.xpose.msra.mxu0 %v990
    %1008 = vmatmul.f32.gmra.mxu0 %v987
    %v1009 = vpop.f32.mrf.mxu0
    %v1010 = vadd.f32 0.0, %v1009
    %1011 = vdwg.mxu0
    %v1013 = vsel %vm881, %v396, 0
    %v1016 = vsel %vm881, %v636, 0
    %1018 = vmatpush.xpose.msra.mxu0 0.0
    %1019 = vmatpush.xpose.msra.mxu0 0.0
    %1020 = vmatpush.xpose.msra.mxu0 0.0
    %1021 = vmatpush.xpose.msra.mxu0 0.0
    %1022 = vmatpush.xpose.msra.mxu0 0.0
    %1023 = vmatpush.xpose.msra.mxu0 0.0
    %1024 = vmatpush.xpose.msra.mxu0 0.0
    %1025 = vmatpush.xpose.msra.mxu0 0.0
    %1026 = vmatpush.xpose.msra.mxu0 0.0
    %1027 = vmatpush.xpose.msra.mxu0 0.0
    %1028 = vmatpush.xpose.msra.mxu0 0.0
    %1029 = vmatpush.xpose.msra.mxu0 0.0
    %1030 = vmatpush.xpose.msra.mxu0 0.0
    %1031 = vmatpush.xpose.msra.mxu0 0.0
    %1032 = vmatpush.xpose.msra.mxu0 0.0
    %1033 = vmatpush.xpose.msra.mxu0 %v1016
    %1034 = vmatmul.f32.gmra.mxu0 %v1013
    %v1035 = vpop.f32.mrf.mxu0
    %v1036 = vadd.f32 0.0, %v1035
    %1037 = vdwg.mxu0
    %v1039 = vsel %vm881, %v398, 0
    %v1042 = vsel %vm881, %v638, 0
    %1044 = vmatpush.xpose.msra.mxu0 0.0
    %1045 = vmatpush.xpose.msra.mxu0 0.0
    %1046 = vmatpush.xpose.msra.mxu0 0.0
    %1047 = vmatpush.xpose.msra.mxu0 0.0
    %1048 = vmatpush.xpose.msra.mxu0 0.0
    %1049 = vmatpush.xpose.msra.mxu0 0.0
    %1050 = vmatpush.xpose.msra.mxu0 0.0
    %1051 = vmatpush.xpose.msra.mxu0 0.0
    %1052 = vmatpush.xpose.msra.mxu0 0.0
    %1053 = vmatpush.xpose.msra.mxu0 0.0
    %1054 = vmatpush.xpose.msra.mxu0 0.0
    %1055 = vmatpush.xpose.msra.mxu0 0.0
    %1056 = vmatpush.xpose.msra.mxu0 0.0
    %1057 = vmatpush.xpose.msra.mxu0 0.0
    %1058 = vmatpush.xpose.msra.mxu0 0.0
    %1059 = vmatpush.xpose.msra.mxu0 %v1042
    %1060 = vmatmul.f32.gmra.mxu0 %v1039
    %v1061 = vpop.f32.mrf.mxu0
    %v1062 = vadd.f32 0.0, %v1061
    %1063 = vdwg.mxu0
    %v1065 = vsel %vm881, %v400, 0
    %v1068 = vsel %vm881, %v640, 0
    %1070 = vmatpush.xpose.msra.mxu0 0.0
    %1071 = vmatpush.xpose.msra.mxu0 0.0
    %1072 = vmatpush.xpose.msra.mxu0 0.0
    %1073 = vmatpush.xpose.msra.mxu0 0.0
    %1074 = vmatpush.xpose.msra.mxu0 0.0
    %1075 = vmatpush.xpose.msra.mxu0 0.0
    %1076 = vmatpush.xpose.msra.mxu0 0.0
    %1077 = vmatpush.xpose.msra.mxu0 0.0
    %1078 = vmatpush.xpose.msra.mxu0 0.0
    %1079 = vmatpush.xpose.msra.mxu0 0.0
    %1080 = vmatpush.xpose.msra.mxu0 0.0
    %1081 = vmatpush.xpose.msra.mxu0 0.0
    %1082 = vmatpush.xpose.msra.mxu0 0.0
    %1083 = vmatpush.xpose.msra.mxu0 0.0
    %1084 = vmatpush.xpose.msra.mxu0 0.0
    %1085 = vmatpush.xpose.msra.mxu0 %v1068
    %1086 = vmatmul.f32.gmra.mxu0 %v1065
    %v1087 = vpop.f32.mrf.mxu0
    %v1088 = vadd.f32 0.0, %v1087
    %1089 = vdwg.mxu0
    %v1090 = vsel %vm881, %v906, -inf
    %1091 = vmax.xlane.f32.xlu0 %v1090
    %v1092 = vpop.xlane.xlu0 %1091
    %v1093 = vsel %vm881, %v932, -inf
    %1094 = vmax.xlane.f32.xlu0 %v1093
    %v1095 = vpop.xlane.xlu0 %1094
    %v1096 = vsel %vm881, %v958, -inf
    %1097 = vmax.xlane.f32.xlu0 %v1096
    %v1098 = vpop.xlane.xlu0 %1097
    %v1099 = vsel %vm881, %v984, -inf
    %1100 = vmax.xlane.f32.xlu0 %v1099
    %v1101 = vpop.xlane.xlu0 %1100
    %v1102 = vsel %vm881, %v1010, -inf
    %1103 = vmax.xlane.f32.xlu0 %v1102
    %v1104 = vpop.xlane.xlu0 %1103
    %v1105 = vsel %vm881, %v1036, -inf
    %1106 = vmax.xlane.f32.xlu0 %v1105
    %v1107 = vpop.xlane.xlu0 %1106
    %v1108 = vsel %vm881, %v1062, -inf
    %1109 = vmax.xlane.f32.xlu0 %v1108
    %v1110 = vpop.xlane.xlu0 %1109
    %v1111 = vsel %vm881, %v1088, -inf
    %1112 = vmax.xlane.f32.xlu0 %v1111
    %v1113 = vpop.xlane.xlu0 %1112
    %v1114 = vsub.f32 %v906, %v1092
    %v1115 = vsub.f32 %v932, %v1095
    %v1116 = vsub.f32 %v958, %v1098
    %v1117 = vsub.f32 %v984, %v1101
    %v1118 = vsub.f32 %v1010, %v1104
    %v1119 = vsub.f32 %v1036, %v1107
    %v1120 = vsub.f32 %v1062, %v1110
    %v1121 = vsub.f32 %v1088, %v1113
    %v1122 = vmul.f32 %v1114, 1.442695
    %v1123 = vpow.pop %v1122
    %v1124 = vmul.f32 %v1115, 1.442695
    %v1125 = vpow.pop %v1124
    %v1126 = vmul.f32 %v1116, 1.442695
    %v1127 = vpow.pop %v1126
    %v1128 = vmul.f32 %v1117, 1.442695
    %v1129 = vpow.pop %v1128
    %v1130 = vmul.f32 %v1118, 1.442695
    %v1131 = vpow.pop %v1130
    %v1132 = vmul.f32 %v1119, 1.442695
    %v1133 = vpow.pop %v1132
    %v1134 = vmul.f32 %v1120, 1.442695
    %v1135 = vpow.pop %v1134
    %v1136 = vmul.f32 %v1121, 1.442695
    %v1137 = vpow.pop %v1136
    %v1138 = vsel %vm881, %v1123, 0.0
    %1139 = vadd.xlane.f32.xlu0 %v1138
    %v1140 = vpop.xlane.xlu0 %1139
    %v1141 = vsel %vm881, %v1125, 0.0
    %1142 = vadd.xlane.f32.xlu0 %v1141
    %v1143 = vpop.xlane.xlu0 %1142
    %v1144 = vsel %vm881, %v1127, 0.0
    %1145 = vadd.xlane.f32.xlu0 %v1144
    %v1146 = vpop.xlane.xlu0 %1145
    %v1147 = vsel %vm881, %v1129, 0.0
    %1148 = vadd.xlane.f32.xlu0 %v1147
    %v1149 = vpop.xlane.xlu0 %1148
    %v1150 = vsel %vm881, %v1131, 0.0
    %1151 = vadd.xlane.f32.xlu0 %v1150
    %v1152 = vpop.xlane.xlu0 %1151
    %v1153 = vsel %vm881, %v1133, 0.0
    %1154 = vadd.xlane.f32.xlu0 %v1153
    %v1155 = vpop.xlane.xlu0 %1154
    %v1156 = vsel %vm881, %v1135, 0.0
    %1157 = vadd.xlane.f32.xlu0 %v1156
    %v1158 = vpop.xlane.xlu0 %1157
    %v1159 = vsel %vm881, %v1137, 0.0
    %1160 = vadd.xlane.f32.xlu0 %v1159
    %v1161 = vpop.xlane.xlu0 %1160
    %v1162 = vrcp.pop %v1140
    %v1163 = vrcp.pop %v1143
    %v1164 = vrcp.pop %v1146
    %v1165 = vrcp.pop %v1149
    %v1166 = vrcp.pop %v1152
    %v1167 = vrcp.pop %v1155
    %v1168 = vrcp.pop %v1158
    %v1169 = vrcp.pop %v1161
    %v1170 = vmul.f32 %v1123, %v1162
    %v1171 = vmul.f32 %v1125, %v1163
    %v1172 = vmul.f32 %v1127, %v1164
    %v1173 = vmul.f32 %v1129, %v1165
    %v1174 = vmul.f32 %v1131, %v1166
    %v1175 = vmul.f32 %v1133, %v1167
    %v1176 = vmul.f32 %v1135, %v1168
    %v1177 = vmul.f32 %v1137, %v1169
    %v1179 = vsel %vm881, %v1170, 0
    %1181 = vmatpush.msra.mxu0 0.0
    %1182 = vmatpush.msra.mxu0 0.0
    %1183 = vmatpush.msra.mxu0 0.0
    %1184 = vmatpush.msra.mxu0 0.0
    %1185 = vmatpush.msra.mxu0 0.0
    %1186 = vmatpush.msra.mxu0 0.0
    %1187 = vmatpush.msra.mxu0 0.0
    %1188 = vmatpush.msra.mxu0 0.0
    %1189 = vmatpush.msra.mxu0 0.0
    %1190 = vmatpush.msra.mxu0 0.0
    %1191 = vmatpush.msra.mxu0 0.0
    %1192 = vmatpush.msra.mxu0 0.0
    %1193 = vmatpush.msra.mxu0 0.0
    %1194 = vmatpush.msra.mxu0 0.0
    %1195 = vmatpush.msra.mxu0 0.0
    %1196 = vmatpush.msra.mxu0 %v820
    %1197 = vmatmul.f32.gmra.mxu0 %v1179
    %v1198 = vpop.f32.mrf.mxu0
    %v1199 = vadd.f32 0.0, %v1198
    %1200 = vdwg.mxu0
    %v1202 = vsel %vm881, %v1171, 0
    %1204 = vmatpush.msra.mxu0 0.0
    %1205 = vmatpush.msra.mxu0 0.0
    %1206 = vmatpush.msra.mxu0 0.0
    %1207 = vmatpush.msra.mxu0 0.0
    %1208 = vmatpush.msra.mxu0 0.0
    %1209 = vmatpush.msra.mxu0 0.0
    %1210 = vmatpush.msra.mxu0 0.0
    %1211 = vmatpush.msra.mxu0 0.0
    %1212 = vmatpush.msra.mxu0 0.0
    %1213 = vmatpush.msra.mxu0 0.0
    %1214 = vmatpush.msra.mxu0 0.0
    %1215 = vmatpush.msra.mxu0 0.0
    %1216 = vmatpush.msra.mxu0 0.0
    %1217 = vmatpush.msra.mxu0 0.0
    %1218 = vmatpush.msra.mxu0 0.0
    %1219 = vmatpush.msra.mxu0 %v822
    %1220 = vmatmul.f32.gmra.mxu0 %v1202
    %v1221 = vpop.f32.mrf.mxu0
    %v1222 = vadd.f32 0.0, %v1221
    %1223 = vdwg.mxu0
    %v1225 = vsel %vm881, %v1172, 0
    %1227 = vmatpush.msra.mxu0 0.0
    %1228 = vmatpush.msra.mxu0 0.0
    %1229 = vmatpush.msra.mxu0 0.0
    %1230 = vmatpush.msra.mxu0 0.0
    %1231 = vmatpush.msra.mxu0 0.0
    %1232 = vmatpush.msra.mxu0 0.0
    %1233 = vmatpush.msra.mxu0 0.0
    %1234 = vmatpush.msra.mxu0 0.0
    %1235 = vmatpush.msra.mxu0 0.0
    %1236 = vmatpush.msra.mxu0 0.0
    %1237 = vmatpush.msra.mxu0 0.0
    %1238 = vmatpush.msra.mxu0 0.0
    %1239 = vmatpush.msra.mxu0 0.0
    %1240 = vmatpush.msra.mxu0 0.0
    %1241 = vmatpush.msra.mxu0 0.0
    %1242 = vmatpush.msra.mxu0 %v824
    %1243 = vmatmul.f32.gmra.mxu0 %v1225
    %v1244 = vpop.f32.mrf.mxu0
    %v1245 = vadd.f32 0.0, %v1244
    %1246 = vdwg.mxu0
    %v1248 = vsel %vm881, %v1173, 0
    %1250 = vmatpush.msra.mxu0 0.0
    %1251 = vmatpush.msra.mxu0 0.0
    %1252 = vmatpush.msra.mxu0 0.0
    %1253 = vmatpush.msra.mxu0 0.0
    %1254 = vmatpush.msra.mxu0 0.0
    %1255 = vmatpush.msra.mxu0 0.0
    %1256 = vmatpush.msra.mxu0 0.0
    %1257 = vmatpush.msra.mxu0 0.0
    %1258 = vmatpush.msra.mxu0 0.0
    %1259 = vmatpush.msra.mxu0 0.0
    %1260 = vmatpush.msra.mxu0 0.0
    %1261 = vmatpush.msra.mxu0 0.0
    %1262 = vmatpush.msra.mxu0 0.0
    %1263 = vmatpush.msra.mxu0 0.0
    %1264 = vmatpush.msra.mxu0 0.0
    %1265 = vmatpush.msra.mxu0 %v826
    %1266 = vmatmul.f32.gmra.mxu0 %v1248
    %v1267 = vpop.f32.mrf.mxu0
    %v1268 = vadd.f32 0.0, %v1267
    %1269 = vdwg.mxu0
    %v1271 = vsel %vm881, %v1174, 0
    %1273 = vmatpush.msra.mxu0 0.0
    %1274 = vmatpush.msra.mxu0 0.0
    %1275 = vmatpush.msra.mxu0 0.0
    %1276 = vmatpush.msra.mxu0 0.0
    %1277 = vmatpush.msra.mxu0 0.0
    %1278 = vmatpush.msra.mxu0 0.0
    %1279 = vmatpush.msra.mxu0 0.0
    %1280 = vmatpush.msra.mxu0 0.0
    %1281 = vmatpush.msra.mxu0 0.0
    %1282 = vmatpush.msra.mxu0 0.0
    %1283 = vmatpush.msra.mxu0 0.0
    %1284 = vmatpush.msra.mxu0 0.0
    %1285 = vmatpush.msra.mxu0 0.0
    %1286 = vmatpush.msra.mxu0 0.0
    %1287 = vmatpush.msra.mxu0 0.0
    %1288 = vmatpush.msra.mxu0 %v874
    %1289 = vmatmul.f32.gmra.mxu0 %v1271
    %v1290 = vpop.f32.mrf.mxu0
    %v1291 = vadd.f32 0.0, %v1290
    %1292 = vdwg.mxu0
    %v1294 = vsel %vm881, %v1175, 0
    %1296 = vmatpush.msra.mxu0 0.0
    %1297 = vmatpush.msra.mxu0 0.0
    %1298 = vmatpush.msra.mxu0 0.0
    %1299 = vmatpush.msra.mxu0 0.0
    %1300 = vmatpush.msra.mxu0 0.0
    %1301 = vmatpush.msra.mxu0 0.0
    %1302 = vmatpush.msra.mxu0 0.0
    %1303 = vmatpush.msra.mxu0 0.0
    %1304 = vmatpush.msra.mxu0 0.0
    %1305 = vmatpush.msra.mxu0 0.0
    %1306 = vmatpush.msra.mxu0 0.0
    %1307 = vmatpush.msra.mxu0 0.0
    %1308 = vmatpush.msra.mxu0 0.0
    %1309 = vmatpush.msra.mxu0 0.0
    %1310 = vmatpush.msra.mxu0 0.0
    %1311 = vmatpush.msra.mxu0 %v876
    %1312 = vmatmul.f32.gmra.mxu0 %v1294
    %v1313 = vpop.f32.mrf.mxu0
    %v1314 = vadd.f32 0.0, %v1313
    %1315 = vdwg.mxu0
    %v1317 = vsel %vm881, %v1176, 0
    %1319 = vmatpush.msra.mxu0 0.0
    %1320 = vmatpush.msra.mxu0 0.0
    %1321 = vmatpush.msra.mxu0 0.0
    %1322 = vmatpush.msra.mxu0 0.0
    %1323 = vmatpush.msra.mxu0 0.0
    %1324 = vmatpush.msra.mxu0 0.0
    %1325 = vmatpush.msra.mxu0 0.0
    %1326 = vmatpush.msra.mxu0 0.0
    %1327 = vmatpush.msra.mxu0 0.0
    %1328 = vmatpush.msra.mxu0 0.0
    %1329 = vmatpush.msra.mxu0 0.0
    %1330 = vmatpush.msra.mxu0 0.0
    %1331 = vmatpush.msra.mxu0 0.0
    %1332 = vmatpush.msra.mxu0 0.0
    %1333 = vmatpush.msra.mxu0 0.0
    %1334 = vmatpush.msra.mxu0 %v878
    %1335 = vmatmul.f32.gmra.mxu0 %v1317
    %v1336 = vpop.f32.mrf.mxu0
    %v1337 = vadd.f32 0.0, %v1336
    %1338 = vdwg.mxu0
    %v1340 = vsel %vm881, %v1177, 0
    %1342 = vmatpush.msra.mxu0 0.0
    %1343 = vmatpush.msra.mxu0 0.0
    %1344 = vmatpush.msra.mxu0 0.0
    %1345 = vmatpush.msra.mxu0 0.0
    %1346 = vmatpush.msra.mxu0 0.0
    %1347 = vmatpush.msra.mxu0 0.0
    %1348 = vmatpush.msra.mxu0 0.0
    %1349 = vmatpush.msra.mxu0 0.0
    %1350 = vmatpush.msra.mxu0 0.0
    %1351 = vmatpush.msra.mxu0 0.0
    %1352 = vmatpush.msra.mxu0 0.0
    %1353 = vmatpush.msra.mxu0 0.0
    %1354 = vmatpush.msra.mxu0 0.0
    %1355 = vmatpush.msra.mxu0 0.0
    %1356 = vmatpush.msra.mxu0 0.0
    %1357 = vmatpush.msra.mxu0 %v880
    %1358 = vmatmul.f32.gmra.mxu0 %v1340
    %v1359 = vpop.f32.mrf.mxu0
    %v1360 = vadd.f32 0.0, %v1359
    %1361 = vdwg.mxu0
    %v1362 = vrot.slane %v1245, 4
    %v1363 = vsel %vm181, %v1362, %v1199
    %v1364 = vrot.slane %v1199, 4
    %v1365 = vsel %vm181, %v1245, %v1364
    %v1367 = vunpack.c.l.s4 1983009808
    %v1368 = vunpack.c.0.s8 %v1367
    %v1369 = vperm.slane %v1363, %v1368
    %v1371 = vunpack.c.l.s4 1983009808
    %v1372 = vunpack.c.0.s8 %v1371
    %v1373 = vperm.slane %v1365, %v1372
    %v1374 = vrot.slane %v1268, 4
    %v1375 = vsel %vm181, %v1374, %v1222
    %v1376 = vrot.slane %v1222, 4
    %v1377 = vsel %vm181, %v1268, %v1376
    %v1379 = vunpack.c.l.s4 1983009808
    %v1380 = vunpack.c.0.s8 %v1379
    %v1381 = vperm.slane %v1375, %v1380
    %v1383 = vunpack.c.l.s4 1983009808
    %v1384 = vunpack.c.0.s8 %v1383
    %v1385 = vperm.slane %v1377, %v1384
    %v1386 = vrot.slane %v1381, 4
    %v1387 = vsel %vm181, %v1386, %v1369
    %v1388 = vrot.slane %v1369, 4
    %v1389 = vsel %vm181, %v1381, %v1388
    %v1391 = vunpack.c.l.s4 1934713408
    %v1392 = vunpack.c.0.s8 %v1391
    %v1393 = vperm.slane %v1387, %v1392
    %v1395 = vunpack.c.l.s4 1934713408
    %v1396 = vunpack.c.0.s8 %v1395
    %v1397 = vperm.slane %v1389, %v1396
    %v1398 = vrot.slane %v1385, 4
    %v1399 = vsel %vm181, %v1398, %v1373
    %v1400 = vrot.slane %v1373, 4
    %v1401 = vsel %vm181, %v1385, %v1400
    %v1403 = vunpack.c.l.s4 1934713408
    %v1404 = vunpack.c.0.s8 %v1403
    %v1405 = vperm.slane %v1399, %v1404
    %v1407 = vunpack.c.l.s4 1934713408
    %v1408 = vunpack.c.0.s8 %v1407
    %v1409 = vperm.slane %v1401, %v1408
    %v1410 = vrot.slane %v1393, 4
    %v1411 = vsel %vm181, 0.0, %v1410
    %v1412 = vrot.slane %v1397, 4
    %v1413 = vsel %vm181, 0.0, %v1412
    %v1414 = vrot.slane %v1405, 4
    %v1415 = vsel %vm181, 0.0, %v1414
    %v1416 = vrot.slane %v1409, 4
    %v1417 = vsel %vm181, 0.0, %v1416
    %v1418 = vrot.slane %v1337, 4
    %v1419 = vsel %vm181, %v1418, %v1291
    %v1420 = vrot.slane %v1291, 4
    %v1421 = vsel %vm181, %v1337, %v1420
    %v1423 = vunpack.c.l.s4 1983009808
    %v1424 = vunpack.c.0.s8 %v1423
    %v1425 = vperm.slane %v1419, %v1424
    %v1427 = vunpack.c.l.s4 1983009808
    %v1428 = vunpack.c.0.s8 %v1427
    %v1429 = vperm.slane %v1421, %v1428
    %v1430 = vrot.slane %v1360, 4
    %v1431 = vsel %vm181, %v1430, %v1314
    %v1432 = vrot.slane %v1314, 4
    %v1433 = vsel %vm181, %v1360, %v1432
    %v1435 = vunpack.c.l.s4 1983009808
    %v1436 = vunpack.c.0.s8 %v1435
    %v1437 = vperm.slane %v1431, %v1436
    %v1439 = vunpack.c.l.s4 1983009808
    %v1440 = vunpack.c.0.s8 %v1439
    %v1441 = vperm.slane %v1433, %v1440
    %v1442 = vrot.slane %v1437, 4
    %v1443 = vsel %vm181, %v1442, %v1425
    %v1444 = vrot.slane %v1425, 4
    %v1445 = vsel %vm181, %v1437, %v1444
    %v1447 = vunpack.c.l.s4 1934713408
    %v1448 = vunpack.c.0.s8 %v1447
    %v1449 = vperm.slane %v1443, %v1448
    %v1451 = vunpack.c.l.s4 1934713408
    %v1452 = vunpack.c.0.s8 %v1451
    %v1453 = vperm.slane %v1445, %v1452
    %v1454 = vrot.slane %v1441, 4
    %v1455 = vsel %vm181, %v1454, %v1429
    %v1456 = vrot.slane %v1429, 4
    %v1457 = vsel %vm181, %v1441, %v1456
    %v1459 = vunpack.c.l.s4 1934713408
    %v1460 = vunpack.c.0.s8 %v1459
    %v1461 = vperm.slane %v1455, %v1460
    %v1463 = vunpack.c.l.s4 1934713408
    %v1464 = vunpack.c.0.s8 %v1463
    %v1465 = vperm.slane %v1457, %v1464
    %v1466 = vrot.slane %v1449, 4
    %v1467 = vsel %vm181, 0.0, %v1466
    %v1468 = vrot.slane %v1453, 4
    %v1469 = vsel %vm181, 0.0, %v1468
    %v1470 = vrot.slane %v1461, 4
    %v1471 = vsel %vm181, 0.0, %v1470
    %v1472 = vrot.slane %v1465, 4
    %v1473 = vsel %vm181, 0.0, %v1472
    %v1474 = vsel %vm181, %v1412, %v1393
    %v1476 = vunpack.c.l.s4 1983009808
    %v1477 = vunpack.c.0.s8 %v1476
    %v1478 = vperm.slane %v1474, %v1477
    %v1479 = vrot.slane %v1413, 4
    %v1480 = vsel %vm181, %v1479, %v1411
    %v1482 = vunpack.c.l.s4 1983009808
    %v1483 = vunpack.c.0.s8 %v1482
    %v1484 = vperm.slane %v1480, %v1483
    %v1485 = vsel %vm181, %v1416, %v1405
    %v1487 = vunpack.c.l.s4 1983009808
    %v1488 = vunpack.c.0.s8 %v1487
    %v1489 = vperm.slane %v1485, %v1488
    %v1490 = vrot.slane %v1417, 4
    %v1491 = vsel %vm181, %v1490, %v1415
    %v1493 = vunpack.c.l.s4 1983009808
    %v1494 = vunpack.c.0.s8 %v1493
    %v1495 = vperm.slane %v1491, %v1494
    %v1496 = vrot.slane %v1484, 4
    %v1497 = vsel %vm181, %v1496, %v1478
    %v1498 = vrot.slane %v1478, 4
    %v1499 = vsel %vm181, %v1484, %v1498
    %v1501 = vunpack.c.l.s4 1934713408
    %v1502 = vunpack.c.0.s8 %v1501
    %v1503 = vperm.slane %v1497, %v1502
    %v1505 = vunpack.c.l.s4 1934713408
    %v1506 = vunpack.c.0.s8 %v1505
    %v1507 = vperm.slane %v1499, %v1506
    %v1508 = vrot.slane %v1495, 4
    %v1509 = vsel %vm181, %v1508, %v1489
    %v1510 = vrot.slane %v1489, 4
    %v1511 = vsel %vm181, %v1495, %v1510
    %v1513 = vunpack.c.l.s4 1934713408
    %v1514 = vunpack.c.0.s8 %v1513
    %v1515 = vperm.slane %v1509, %v1514
    %v1517 = vunpack.c.l.s4 1934713408
    %v1518 = vunpack.c.0.s8 %v1517
    %v1519 = vperm.slane %v1511, %v1518
    %v1520 = vrot.slane %v1515, 4
    %v1521 = vsel %vm181, %v1520, %v1503
    %v1522 = vrot.slane %v1503, 4
    %v1523 = vsel %vm181, %v1515, %v1522
    %v1524 = vrot.slane %v1519, 4
    %v1525 = vsel %vm181, %v1524, %v1507
    %v1526 = vrot.slane %v1507, 4
    %v1527 = vsel %vm181, %v1519, %v1526
    %v1528 = vsel %vm181, %v1468, %v1449
    %v1530 = vunpack.c.l.s4 1983009808
    %v1531 = vunpack.c.0.s8 %v1530
    %v1532 = vperm.slane %v1528, %v1531
    %v1533 = vrot.slane %v1469, 4
    %v1534 = vsel %vm181, %v1533, %v1467
    %v1536 = vunpack.c.l.s4 1983009808
    %v1537 = vunpack.c.0.s8 %v1536
    %v1538 = vperm.slane %v1534, %v1537
    %v1539 = vsel %vm181, %v1472, %v1461
    %v1541 = vunpack.c.l.s4 1983009808
    %v1542 = vunpack.c.0.s8 %v1541
    %v1543 = vperm.slane %v1539, %v1542
    %v1544 = vrot.slane %v1473, 4
    %v1545 = vsel %vm181, %v1544, %v1471
    %v1547 = vunpack.c.l.s4 1983009808
    %v1548 = vunpack.c.0.s8 %v1547
    %v1549 = vperm.slane %v1545, %v1548
    %v1550 = vrot.slane %v1538, 4
    %v1551 = vsel %vm181, %v1550, %v1532
    %v1552 = vrot.slane %v1532, 4
    %v1553 = vsel %vm181, %v1538, %v1552
    %v1555 = vunpack.c.l.s4 1934713408
    %v1556 = vunpack.c.0.s8 %v1555
    %v1557 = vperm.slane %v1551, %v1556
    %v1559 = vunpack.c.l.s4 1934713408
    %v1560 = vunpack.c.0.s8 %v1559
    %v1561 = vperm.slane %v1553, %v1560
    %v1562 = vrot.slane %v1549, 4
    %v1563 = vsel %vm181, %v1562, %v1543
    %v1564 = vrot.slane %v1543, 4
    %v1565 = vsel %vm181, %v1549, %v1564
    %v1567 = vunpack.c.l.s4 1934713408
    %v1568 = vunpack.c.0.s8 %v1567
    %v1569 = vperm.slane %v1563, %v1568
    %v1571 = vunpack.c.l.s4 1934713408
    %v1572 = vunpack.c.0.s8 %v1571
    %v1573 = vperm.slane %v1565, %v1572
    %v1574 = vrot.slane %v1569, 4
    %v1575 = vsel %vm181, %v1574, %v1557
    %v1576 = vrot.slane %v1557, 4
    %v1577 = vsel %vm181, %v1569, %v1576
    %v1578 = vrot.slane %v1573, 4
    %v1579 = vsel %vm181, %v1578, %v1561
    %v1580 = vrot.slane %v1561, 4
    %v1581 = vsel %vm181, %v1573, %v1580
    %1584 = vrot.lane.b32.xlu0 %v1523, 8
    %v1585 = vpop.permute.xlu0 %1584
    %1586 = vrot.lane.b32.xlu0 %v1577, 8
    %v1587 = vpop.permute.xlu0 %1586
    %1592 = vrot.lane.b32.xlu0 %v1525, 16
    %v1593 = vpop.permute.xlu0 %1592
    %1594 = vrot.lane.b32.xlu0 %v1579, 16
    %v1595 = vpop.permute.xlu0 %1594
    %1600 = vrot.lane.b32.xlu0 %v1527, 24
    %v1601 = vpop.permute.xlu0 %1600
    %1602 = vrot.lane.b32.xlu0 %v1581, 24
    %v1603 = vpop.permute.xlu0 %1602
    %v1606 = vsel %vm881, %v1521, %v1585
    %v1607 = vsel %vm881, %v1575, %v1587
    %vm1608 = vcmask 130048
    %v1609 = vsel %vm1608, %v1606, %v1593
    %v1610 = vsel %vm1608, %v1607, %v1595
    %vm1611 = vcmask 195584
    %v1612 = vsel %vm1611, %v1609, %v1601
    %v1613 = vsel %vm1611, %v1610, %v1603
    %v1614 = vld [vmem:[%s3] sm:$0xff]
    %v1615 = vld [vmem:[%s3 + $0x8] sm:$0xff]
    %v1616 = vld [vmem:[%s3 + $0x10] sm:$0xff]
    %v1617 = vld [vmem:[%s3 + $0x18] sm:$0xff]
    %v1618 = vperm.slane %v44, 3
    %v1620 = vsel %vm57, %v1612, 0
    %v1623 = vsel %vm57, %v1613, 0
    %1625 = vmatpush.msra.mxu0 0.0
    %1626 = vmatpush.msra.mxu0 0.0
    %1627 = vmatpush.msra.mxu0 0.0
    %1628 = vmatpush.msra.mxu0 0.0
    %1629 = vmatpush.msra.mxu0 0.0
    %1630 = vmatpush.msra.mxu0 0.0
    %1631 = vmatpush.msra.mxu0 0.0
    %1632 = vmatpush.msra.mxu0 0.0
    %1633 = vmatpush.msra.mxu0 0.0
    %1634 = vmatpush.msra.mxu0 0.0
    %1635 = vmatpush.msra.mxu0 0.0
    %1636 = vmatpush.msra.mxu0 0.0
    %1637 = vmatpush.msra.mxu0 %v1617
    %1638 = vmatpush.msra.mxu0 %v1616
    %1639 = vmatpush.msra.mxu0 %v1615
    %1640 = vmatpush.msra.mxu0 %v1614
    %1641 = vmatmul.f32.gmra.mxu0 %v1620
    %v1642 = vpop.f32.mrf.mxu0
    %v1643 = vadd.f32 %v1618, %v1642
    %1644 = vmatmul.f32.gmra.mxu0 %v1623
    %v1645 = vpop.f32.mrf.mxu0
    %v1646 = vadd.f32 %v1618, %v1645
    %1647 = vdwg.mxu0
    %v1648 = vmax.f32 %v1643, 0.0
    %v1649 = vmax.f32 %v1646, 0.0
    %v1650 = vld [vmem:[%s4] sm:$0xff]
    %v1651 = vld [vmem:[%s4 + $0x8] sm:$0xff]
    %v1652 = vld [vmem:[%s4 + $0x10] sm:$0xff]
    %v1653 = vld [vmem:[%s4 + $0x18] sm:$0xff]
    %v1654 = vld [vmem:[%s4 + $0x20] sm:$0xff]
    %v1655 = vld [vmem:[%s4 + $0x28] sm:$0xff]
    %v1656 = vld [vmem:[%s4 + $0x30] sm:$0xff]
    %v1657 = vld [vmem:[%s4 + $0x38] sm:$0xff]
    %v1658 = vld [vmem:[%s4 + $0x40] sm:$0xff]
    %v1659 = vld [vmem:[%s4 + $0x48] sm:$0xff]
    %v1660 = vld [vmem:[%s4 + $0x50] sm:$0xff]
    %v1661 = vld [vmem:[%s4 + $0x58] sm:$0xff]
    %v1662 = vld [vmem:[%s4 + $0x60] sm:$0xff]
    %v1663 = vld [vmem:[%s4 + $0x68] sm:$0xff]
    %v1664 = vld [vmem:[%s4 + $0x70] sm:$0xff]
    %v1665 = vld [vmem:[%s4 + $0x78] sm:$0xff]
    %v1666 = vperm.slane %v44, 4
    %1667 = vmatpush.msra.mxu0 %v1665
    %1668 = vmatpush.msra.mxu0 %v1664
    %1669 = vmatpush.msra.mxu0 %v1663
    %1670 = vmatpush.msra.mxu0 %v1662
    %1671 = vmatpush.msra.mxu0 %v1661
    %1672 = vmatpush.msra.mxu0 %v1660
    %1673 = vmatpush.msra.mxu0 %v1659
    %1674 = vmatpush.msra.mxu0 %v1658
    %1675 = vmatpush.msra.mxu0 %v1657
    %1676 = vmatpush.msra.mxu0 %v1656
    %1677 = vmatpush.msra.mxu0 %v1655
    %1678 = vmatpush.msra.mxu0 %v1654
    %1679 = vmatpush.msra.mxu0 %v1653
    %1680 = vmatpush.msra.mxu0 %v1652
    %1681 = vmatpush.msra.mxu0 %v1651
    %1682 = vmatpush.msra.mxu0 %v1650
    %1683 = vmatmul.f32.gmra.mxu0 %v1648
    %v1684 = vpop.f32.mrf.mxu0
    %v1685 = vadd.f32 %v1666, %v1684
    %1686 = vmatmul.f32.gmra.mxu0 %v1649
    %v1687 = vpop.f32.mrf.mxu0
    %v1688 = vadd.f32 %v1666, %v1687
    %1689 = vdwg.mxu0
    %v1690 = vadd.f32 %v1685, %v38
    %v1691 = vadd.f32 %v1688, %v39
    %v1692 = vsel %vm57, %v1690, 0.0
    %1693 = vadd.xlane.f32.xlu0 %v1692
    %v1694 = vpop.xlane.xlu0 %1693
    %v1695 = vsel %vm57, %v1691, 0.0
    %1696 = vadd.xlane.f32.xlu0 %v1695
    %v1697 = vpop.xlane.xlu0 %1696
    %v1698 = vrcp.pop 32.0
    %v1699 = vmul.f32 32.0, %v1698
    %v1700 = vsub.f32 1.0, %v1699
    %v1701 = vmul.f32 %v1698, %v1700
    %v1702 = vadd.f32 %v1698, %v1701
    %vm1703 = vweird.f32 %v1698
    %v1704 = vsel %vm1703, %v1698, %v1702
    %v1705 = vmul.f32 %v1694, %v1704
    %v1706 = vmul.f32 %v1697, %v1704
    %v1707 = vsub.f32 %v1690, %v1705
    %v1708 = vsub.f32 %v1691, %v1706
    %v1709 = vmul.f32 %v1707, %v1707
    %v1710 = vmul.f32 %v1708, %v1708
    %v1711 = vsel %vm57, %v1709, 0.0
    %1712 = vadd.xlane.f32.xlu0 %v1711
    %v1713 = vpop.xlane.xlu0 %1712
    %v1714 = vsel %vm57, %v1710, 0.0
    %1715 = vadd.xlane.f32.xlu0 %v1714
    %v1716 = vpop.xlane.xlu0 %1715
    %v1717 = vmul.f32 %v1713, %v1704
    %v1718 = vmul.f32 %v1716, %v1704
    %v1719 = vadd.f32 %v1717, 1e-05
    %v1720 = vadd.f32 %v1718, 1e-05
    %v1721 = vrsqrt.pop %v1719
    %v1722 = vmul.f32 %v1721, %v1719
    %v1723 = vmul.f32 %v1722, %v1721
    %v1724 = vmul.f32 0.5, %v1723
    %v1725 = vsub.f32 1.5, %v1724
    %v1726 = vmul.f32 %v1721, %v1725
    %vm1727 = vweird.f32 %v1719
    %vm1728 = vweird.f32 %v1721
    %vm1729 = vmor %vm1727, %vm1728
    %v1730 = vsel %vm1729, %v1721, %v1726
    %v1731 = vrsqrt.pop %v1720
    %v1732 = vmul.f32 %v1731, %v1720
    %v1733 = vmul.f32 %v1732, %v1731
    %v1734 = vmul.f32 0.5, %v1733
    %v1735 = vsub.f32 1.5, %v1734
    %v1736 = vmul.f32 %v1731, %v1735
    %vm1737 = vweird.f32 %v1720
    %vm1738 = vweird.f32 %v1731
    %vm1739 = vmor %vm1737, %vm1738
    %v1740 = vsel %vm1739, %v1731, %v1736
    %v1741 = vmul.f32 %v1707, %v1730
    %v1742 = vmul.f32 %v1708, %v1740
    %v1743 = vperm.slane %v44, 5
    %v1744 = vmul.f32 %v1741, %v1743
    %v1745 = vmul.f32 %v1742, %v1743
    %v1746 = vperm.slane %v44, 6
    %v1747 = vadd.f32 %v1744, %v1746
    %v1748 = vadd.f32 %v1745, %v1746
    %1749 = vst.msk [vmem:[#allocation5] sm:$0xff] %vm57, %v1747
    %1750 = vst.msk [vmem:[#allocation5 + $0x8] sm:$0xff] %vm57, %v1748
    // Predicated region
    $region30: #{tpu_custom_call.1} parent=1 // pred_check
      _
    $region31: #{tpu_custom_call.1} parent=1 // pred_check_branch
      %1752 = sbr.rel (0) target = $region33
    $region32: #{tpu_custom_call.1} parent=1 // pred_region
      %1754 = vsyncadd [#allocation4], 0
      %s1755 = sshll.u32 [#allocation5], 4
      %s1756 = int_to_ptr.vmem [resolvable:$true] %s1755
      %s1757 = sshll.u32 %s6, 4
      %s1758 = int_to_ptr.hbm [resolvable:$true] %s1757
      %1763 = dma.vmem_to_hbm [thread:$0]  %s1756, 256, %s1758, [#allocation4], 128, 128, 8
    $region33: #{tpu_custom_call.1} parent=1 // pred_fallthru
      _
    // Predicated region
    $region34: #{tpu_custom_call.1} parent=1 // pred_check
      _
    $region35: #{tpu_custom_call.1} parent=1 // pred_check_branch
      %1765 = sbr.rel (0) target = $region37
    $region36: #{tpu_custom_call.1} parent=1 // pred_region
      %1767 = dma.done [#allocation4], 256
    $region37: #{tpu_custom_call.1} parent=1 // pred_fallthru
      _
    %1768 = vsyncpa [#allocation3], 1
    %1769 = vsyncpa [#allocation4], 1

</llo_original>
